<compile_context>
chip_gen: v6e
topology: v6e:2x2x1
jax: 0.10.0
libtpu: 0.0.40
codegen_flags: <defaults>
</compile_context>

<pallas_src>
import functools

import numpy as np

import jax
import jax.numpy as jnp
from jax.experimental import pallas as pl
from jax.experimental.pallas import tpu as pltpu

_VMEM_LIMIT = 40 * 1024 * 1024   # scoped-VMEM limit; safe on v5e/v6e/v7x
_FUSED_MAX_NODES = 2048          # bf16 adj (<=8 MiB) + intermediates fit VMEM on all gens


def _round_up(n, m):
    return ((n + m - 1) // m) * m


# ------------------------- fused small-graph kernel -------------------------

def _fused_kernel(adj_ref, dinv_ref, x_ref, pool_ref,
                  w1_ref, b1_ref, w2_ref, b2_ref, w3_ref, b3_ref,
                  wl_ref, bl_ref, out_ref):
    # Everything VMEM-resident; adjacency read from HBM exactly once.
    a = adj_ref[...]              # bf16 integer counts of A+I (exact)
    dinv = dinv_ref[...]          # (Np, 1) f32

    def conv(h_bf16, w_ref, b_ref, relu):
        # z = H W ; Â z = dinv ⊙ ((A+I) @ (dinv ⊙ z)) ; + b ; [relu]
        z = jnp.dot(h_bf16, w_ref[...], preferred_element_type=jnp.float32)
        zs = (dinv * z).astype(jnp.bfloat16)
        h = dinv * jnp.dot(a, zs, preferred_element_type=jnp.float32) + b_ref[...]
        if relu:
            h = jnp.maximum(h, 0.0)
        return h.astype(jnp.bfloat16)

    h = conv(x_ref[...], w1_ref, b1_ref, True)
    h = conv(h, w2_ref, b2_ref, True)
    h = conv(h, w3_ref, b3_ref, False)

    # global_mean_pool + (eval-mode) dropout identity + Linear
    # TODO(synk): training-mode dropout would need pltpu.prng_seed/prng_random_bits.
    g = jnp.dot(pool_ref[...], h, preferred_element_type=jnp.float32)
    out_ref[...] = (jnp.dot(g.astype(jnp.bfloat16), wl_ref[...],
                            preferred_element_type=jnp.float32) + bl_ref[...])


# --------------------------- tiled large-graph path -------------------------

def _transform_kernel(x_ref, w_ref, dinv_ref, z_ref):
    # z1s = dinv ⊙ (X W1)   (pre-scaled for the first aggregation)
    z = jnp.dot(x_ref[...], w_ref[...], preferred_element_type=jnp.float32)
    z_ref[...] = (dinv_ref[...] * z).astype(z_ref.dtype)


def _transform(x_p, w_p, dinv_p, tm):
    Np, Fp = x_p.shape
    Hp = w_p.shape[1]
    return pl.pallas_call(
        _transform_kernel,
        out_shape=jax.ShapeDtypeStruct((Np, Hp), jnp.bfloat16),
        grid=(Np // tm,),
        in_specs=[pl.BlockSpec((tm, Fp), lambda i: (i, 0)),
                  pl.BlockSpec((Fp, Hp), lambda i: (0, 0)),
                  pl.BlockSpec((tm, 1), lambda i: (i, 0))],
        out_specs=pl.BlockSpec((tm, Hp), lambda i: (i, 0)),
        compiler_params=pltpu.CompilerParams(
            dimension_semantics=("parallel",),
            vmem_limit_bytes=_VMEM_LIMIT),
    )(x_p, w_p, dinv_p)


def _agg_kernel(adj_ref, zs_ref, dinv_ref, b_ref, *rest,
                apply_relu, has_next, tk, z_resident):
    # acc = sum_k (A+I)[i,k] @ zs[k]   (zs already dinv-scaled)
    # finalize: h = dinv*acc + b ; [relu] ; [@ W_next ; * dinv for next layer]
    if has_next:
        w_ref, out_ref, acc_ref = rest
    else:
        out_ref, acc_ref = rest

    k = pl.program_id(1)

    @pl.when(k == 0)
    def _():
        acc_ref[...] = jnp.zeros_like(acc_ref)

    if z_resident:
        off = pl.multiple_of(k * tk, tk)
        zk = zs_ref[pl.ds(off, tk), :]
    else:
        zk = zs_ref[...]

    a_tile = adj_ref[...].astype(jnp.float32).astype(jnp.bfloat16)  # int8 -> bf16 (exact)
    acc_ref[...] += jnp.dot(a_tile, zk, preferred_element_type=jnp.float32)

    @pl.when(k == pl.num_programs(1) - 1)
    def _():
        h = dinv_ref[...] * acc_ref[...] + b_ref[...]
        if apply_relu:
            h = jnp.maximum(h, 0.0)
        if has_next:
            # fuse next layer's feature transform + pre-scale for next aggregation
            h = jnp.dot(h.astype(jnp.bfloat16), w_ref[...],
                        preferred_element_type=jnp.float32)
            h = dinv_ref[...] * h
        out_ref[...] = h.astype(out_ref.dtype)


def _aggregate(adj_p, zs_p, dinv_p, b_p, w_next, tm, tk, apply_relu, z_resident):
    Np = adj_p.shape[0]
    Hp = zs_p.shape[1]
    has_next = w_next is not None
    Ho = w_next.shape[1] if has_next else Hp

    kern = functools.partial(_agg_kernel, apply_relu=apply_relu,
                             has_next=has_next, tk=tk, z_resident=z_resident)

    if z_resident:
        # whole z panel resident in VMEM (constant block index -> DMA'd once per core)
        z_spec = pl.BlockSpec((Np, Hp), lambda i, k: (0, 0))
    else:
        z_spec = pl.BlockSpec((tk, Hp), lambda i, k: (k, 0))

    in_specs = [
        pl.BlockSpec((tm, tk), lambda i, k: (i, k)),   # int8 adjacency tile
        z_spec,
        pl.BlockSpec((tm, 1), lambda i, k: (i, 0)),    # dinv rows
        pl.BlockSpec((1, Hp), lambda i, k: (0, 0)),    # bias
    ]
    inputs = [adj_p, zs_p, dinv_p, b_p]
    if has_next:
        in_specs.append(pl.BlockSpec((Hp, Ho), lambda i, k: (0, 0)))
        inputs.append(w_next)

    return pl.pallas_call(
        kern,
        out_shape=jax.ShapeDtypeStruct((Np, Ho), jnp.bfloat16),
        grid=(Np // tm, Np // tk),
        in_specs=in_specs,
        out_specs=pl.BlockSpec((tm, Ho), lambda i, k: (i, 0)),
        scratch_shapes=[pltpu.VMEM((tm, Hp), jnp.float32)],
        compiler_params=pltpu.CompilerParams(
            dimension_semantics=("parallel", "arbitrary"),
            vmem_limit_bytes=_VMEM_LIMIT),
    )(*inputs)


def _pool_lin_kernel(pool_ref, h_ref, wl_ref, bl_ref, out_ref, acc_ref):
    k = pl.program_id(0)

    @pl.when(k == 0)
    def _():
        acc_ref[...] = jnp.zeros_like(acc_ref)

    acc_ref[...] += jnp.dot(pool_ref[...], h_ref[...],
                            preferred_element_type=jnp.float32)

    @pl.when(k == pl.num_programs(0) - 1)
    def _():
        # dropout(p=0.5) in eval mode is identity.
        out_ref[...] = (jnp.dot(acc_ref[...].astype(jnp.bfloat16), wl_ref[...],
                                preferred_element_type=jnp.float32)
                        + bl_ref[...]).astype(out_ref.dtype)


def _pool_linear(pool_p, h_p, wl_p, bl_p, tk):
    Gp, Np = pool_p.shape
    Hp = h_p.shape[1]
    Cp = wl_p.shape[1]
    return pl.pallas_call(
        _pool_lin_kernel,
        out_shape=jax.ShapeDtypeStruct((Gp, Cp), jnp.float32),
        grid=(Np // tk,),
        in_specs=[pl.BlockSpec((Gp, tk), lambda k: (0, k)),
                  pl.BlockSpec((tk, Hp), lambda k: (k, 0)),
                  pl.BlockSpec((Hp, Cp), lambda k: (0, 0)),
                  pl.BlockSpec((1, Cp), lambda k: (0, 0))],
        out_specs=pl.BlockSpec((Gp, Cp), lambda k: (0, 0)),
        scratch_shapes=[pltpu.VMEM((Gp, Hp), jnp.float32)],
        compiler_params=pltpu.CompilerParams(
            dimension_semantics=("arbitrary",),
            vmem_limit_bytes=_VMEM_LIMIT),
    )(pool_p, h_p, wl_p, bl_p)


# --------------------------------- forward ----------------------------------

def gcn_forward(x, edge_index, batch, params, num_graphs):
    """Full GCN forward. x: (N, F) f32, edge_index: (2, E) int32, batch: (N,) int32."""
    N, F = x.shape
    src, dst = edge_index[0], edge_index[1]

    # A + I as small-integer counts (self-loops folded into the scatter-add);
    # D^-1/2 is applied inside the kernels, so no N^2 normalize/cast passes here.
    # TODO(synk): O(N^2) dense adjacency; large sparse graphs need a block-sparse
    # formulation driven by PrefetchScalarGridSpec neighbor-block lists.
    idx_r = jnp.concatenate([dst, jnp.arange(N, dtype=dst.dtype)])
    idx_c = jnp.concatenate([src, jnp.arange(N, dtype=src.dtype)])
    a = jnp.zeros((N, N), jnp.float32).at[idx_r, idx_c].add(1.0)
    deg = jnp.sum(a, axis=1)
    dinv = jnp.where(deg > 0, 1.0 / jnp.sqrt(deg), 0.0)

    # global_mean_pool as a (G, N) matrix.
    onehot = (batch[None, :] == jnp.arange(num_graphs)[:, None]).astype(jnp.float32)
    counts = jnp.maximum(jnp.sum(onehot, axis=1, keepdims=True), 1.0)
    pool = onehot / counts

    w1, b1, w2, b2, w3, b3, wl, bl = params
    H = w1.shape[1]
    C = wl.shape[1]

    Fp = _round_up(F, 128)
    Hp = _round_up(H, 128)
    Cp = _round_up(C, 128)
    Gp = max(_round_up(num_graphs, 8), 8)

    pad2 = lambda m, r, c: jnp.pad(m, ((0, r - m.shape[0]), (0, c - m.shape[1])))

    # bf16 weights / features (f32 MXU accumulation); biases stay f32.
    w1_p = pad2(w1, Fp, Hp).astype(jnp.bfloat16); b1_p = pad2(b1, 1, Hp)
    w2_p = pad2(w2, Hp, Hp).astype(jnp.bfloat16); b2_p = pad2(b2, 1, Hp)
    w3_p = pad2(w3, Hp, Hp).astype(jnp.bfloat16); b3_p = pad2(b3, 1, Hp)
    wl_p = pad2(wl, Hp, Cp).astype(jnp.bfloat16); bl_p = pad2(bl, 1, Cp)

    if N <= _FUSED_MAX_NODES:
        # ---- fully VMEM-resident fused path (single pallas_call) ----
        Np = max(_round_up(N, 128), 128)
        adj_p = pad2(a, Np, Np).astype(jnp.bfloat16)   # small-integer counts: exact in bf16
        dinv_p = jnp.pad(dinv, (0, Np - N)).reshape(Np, 1)
        x_p = pad2(x, Np, Fp).astype(jnp.bfloat16)
        pool_p = pad2(pool, Gp, Np).astype(jnp.bfloat16)

        out = pl.pallas_call(
            _fused_kernel,
            out_shape=jax.ShapeDtypeStruct((Gp, Cp), jnp.float32),
            compiler_params=pltpu.CompilerParams(vmem_limit_bytes=_VMEM_LIMIT),
        )(adj_p, dinv_p, x_p, pool_p,
          w1_p, b1_p, w2_p, b2_p, w3_p, b3_p, wl_p, bl_p)
    else:
        # ---- tiled path: int8 adjacency tiles, resident z panel, tm=256/tk=512 ----
        tm, tk = 256, 512
        Np = _round_up(N, 512)
        adj_p = pad2(a.astype(jnp.int8), Np, Np)       # counts assumed <= 127
        dinv_p = jnp.pad(dinv, (0, Np - N)).reshape(Np, 1)
        x_p = pad2(x, Np, Fp).astype(jnp.bfloat16)
        pool_p = pad2(pool, Gp, Np).astype(jnp.bfloat16)

        # keep the double-buffered resident z panel <= ~16 MiB of VMEM
        z_resident = (Np * Hp * 2) <= 8 * 1024 * 1024

        z1s = _transform(x_p, w1_p, dinv_p, tm)                              # dinv ⊙ (X W1)
        z2s = _aggregate(adj_p, z1s, dinv_p, b1_p, w2_p, tm, tk, True, z_resident)
        z3s = _aggregate(adj_p, z2s, dinv_p, b2_p, w3_p, tm, tk, True, z_resident)
        h3 = _aggregate(adj_p, z3s, dinv_p, b3_p, None, tm, tk, False, z_resident)
        out = _pool_linear(pool_p, h3, wl_p, bl_p, tk)

    return out[:num_graphs, :C]


def init_params(key, num_features, hidden, num_classes):
    ks = jax.random.split(key, 4)

    def glorot(k, fan_in, fan_out):
        lim = jnp.sqrt(6.0 / (fan_in + fan_out))
        return jax.random.uniform(k, (fan_in, fan_out), jnp.float32, -lim, lim)

    w1 = glorot(ks[0], num_features, hidden); b1 = jnp.zeros((1, hidden), jnp.float32)
    w2 = glorot(ks[1], hidden, hidden);       b2 = jnp.zeros((1, hidden), jnp.float32)
    w3 = glorot(ks[2], hidden, hidden);       b3 = jnp.zeros((1, hidden), jnp.float32)
    wl = glorot(ks[3], hidden, num_classes);  bl = jnp.zeros((1, num_classes), jnp.float32)
    return (w1, b1, w2, b2, w3, b3, wl, bl)


def _gcn_reference(x, edge_index, batch, params, num_graphs):
    """Pure-JAX f32 reference of the same forward pass."""
    N = x.shape[0]
    src, dst = edge_index[0], edge_index[1]
    a = jnp.zeros((N, N), jnp.float32).at[dst, src].add(1.0) + jnp.eye(N, dtype=jnp.float32)
    deg = jnp.sum(a, axis=1)
    dinv = jnp.where(deg > 0, 1.0 / jnp.sqrt(deg), 0.0)
    adj = dinv[:, None] * a * dinv[None, :]
    w1, b1, w2, b2, w3, b3, wl, bl = params
    h = jax.nn.relu(adj @ (x @ w1) + b1)
    h = jax.nn.relu(adj @ (h @ w2) + b2)
    h = adj @ (h @ w3) + b3
    onehot = (batch[None, :] == jnp.arange(num_graphs)[:, None]).astype(jnp.float32)
    pool = onehot / jnp.maximum(jnp.sum(onehot, axis=1, keepdims=True), 1.0)
    return (pool @ h) @ wl + bl


if __name__ == "__main__":
    num_features, hidden, num_classes = 8, 32, 4
    num_nodes, num_graphs = 16, 2

    key = jax.random.PRNGKey(0)
    kx, kp = jax.random.split(key, 2)

    # Node features.
    x = jax.random.normal(kx, (num_nodes, num_features), jnp.float32)

    # Two graphs of 8 nodes each; ring edges within each graph (both directions).
    edges = []
    for g in range(num_graphs):
        base = g * 8
        for i in range(8):
            u, v = base + i, base + (i + 1) % 8
            edges.append((u, v))
            edges.append((v, u))
    edge_index = jnp.array(edges, dtype=jnp.int32).T            # (2, E)
    batch = jnp.repeat(jnp.arange(num_graphs, dtype=jnp.int32), 8)

    params = init_params(kp, num_features, hidden, num_classes)

    fwd = jax.jit(functools.partial(gcn_forward, num_graphs=num_graphs))
    out = fwd(x, edge_index, batch, params)
    jax.block_until_ready(out)
    assert out.shape == (num_graphs, num_classes)

    ref = _gcn_reference(x, edge_index, batch, params, num_graphs)
    assert np.allclose(np.asarray(out), np.asarray(ref), rtol=5e-2, atol=5e-2), (
        "mismatch vs reference:\n%s\n%s" % (np.asarray(out), np.asarray(ref)))

    print("KERNEL_OK")
</pallas_src>

<mosaic_0001>
module attributes {stable_mosaic.version = 11 : i64} {
  func.func private @main(%arg0: i32) attributes {dimension_semantics = [#tpu.dimension_semantics<core_parallel>], iteration_bounds = array<i64: 2>, tpu.core_type = #tpu.core_type<sc_scalar_subcore>, window_params = []} {
    return
  }
}

module attributes {stable_mosaic.version = 11 : i64} {
  func.func private @main(%arg0: i32) attributes {dimension_semantics = [#tpu.dimension_semantics<core_parallel>], iteration_bounds = array<i64: 2>, tpu.core_type = #tpu.core_type<sc_scalar_subcore>, window_params = []} {
    return
  }
}

module attributes {stable_mosaic.version = 11 : i64} {
  func.func @_fused_kernel(%arg0: memref<128x128xbf16, #tpu.memory_space<vmem>>, %arg1: memref<128x1xf32, #tpu.memory_space<vmem>>, %arg2: memref<128x128xbf16, #tpu.memory_space<vmem>>, %arg3: memref<8x128xbf16, #tpu.memory_space<vmem>>, %arg4: memref<128x128xbf16, #tpu.memory_space<vmem>>, %arg5: memref<1x128xf32, #tpu.memory_space<vmem>>, %arg6: memref<128x128xbf16, #tpu.memory_space<vmem>>, %arg7: memref<1x128xf32, #tpu.memory_space<vmem>>, %arg8: memref<128x128xbf16, #tpu.memory_space<vmem>>, %arg9: memref<1x128xf32, #tpu.memory_space<vmem>>, %arg10: memref<128x128xbf16, #tpu.memory_space<vmem>>, %arg11: memref<1x128xf32, #tpu.memory_space<vmem>>, %arg12: memref<8x128xf32, #tpu.memory_space<vmem>>) attributes {dimension_semantics = [], scalar_prefetch = 0 : i64, scratch_operands = 0 : i64, tpu.core_type = #tpu.core_type<tc>} {
    %c0 = arith.constant 0 : index
    %c0_0 = arith.constant 0 : index
    %0 = vector.load %arg0[%c0, %c0_0] : memref<128x128xbf16, #tpu.memory_space<vmem>>, vector<128x128xbf16>
    %c0_1 = arith.constant 0 : index
    %c0_2 = arith.constant 0 : index
    %1 = vector.load %arg1[%c0_1, %c0_2] : memref<128x1xf32, #tpu.memory_space<vmem>>, vector<128x1xf32>
    %c0_3 = arith.constant 0 : index
    %c0_4 = arith.constant 0 : index
    %2 = vector.load %arg2[%c0_3, %c0_4] : memref<128x128xbf16, #tpu.memory_space<vmem>>, vector<128x128xbf16>
    %c0_5 = arith.constant 0 : index
    %c0_6 = arith.constant 0 : index
    %3 = vector.load %arg4[%c0_5, %c0_6] : memref<128x128xbf16, #tpu.memory_space<vmem>>, vector<128x128xbf16>
    %cst = arith.constant dense<0.000000e+00> : vector<128x128xf32>
    %4 = tpu.matmul %2, %3, %cst {dimension_numbers = #tpu.dot_dimension_numbers<[1], [0], [0], [1], [0, 0, 1, 1], [], []>} : vector<128x128xbf16>, vector<128x128xbf16>, vector<128x128xf32> -> vector<128x128xf32>
    %5 = vector.broadcast %1 : vector<128x1xf32> to vector<128x128xf32>
    %6 = arith.mulf %5, %4 : vector<128x128xf32>
    %7 = arith.truncf %6 : vector<128x128xf32> to vector<128x128xbf16>
    %cst_7 = arith.constant dense<0.000000e+00> : vector<128x128xf32>
    %8 = tpu.matmul %0, %7, %cst_7 {dimension_numbers = #tpu.dot_dimension_numbers<[1], [0], [0], [1], [0, 0, 1, 1], [], []>} : vector<128x128xbf16>, vector<128x128xbf16>, vector<128x128xf32> -> vector<128x128xf32>
    %9 = vector.broadcast %1 : vector<128x1xf32> to vector<128x128xf32>
    %10 = arith.mulf %9, %8 : vector<128x128xf32>
    %c0_8 = arith.constant 0 : index
    %c0_9 = arith.constant 0 : index
    %11 = vector.load %arg5[%c0_8, %c0_9] : memref<1x128xf32, #tpu.memory_space<vmem>>, vector<1x128xf32>
    %12 = vector.broadcast %11 : vector<1x128xf32> to vector<128x128xf32>
    %13 = arith.addf %10, %12 : vector<128x128xf32>
    %cst_10 = arith.constant 0.000000e+00 : f32
    %14 = vector.broadcast %cst_10 : f32 to vector<128x128xf32>
    %15 = arith.maximumf %13, %14 : vector<128x128xf32>
    %16 = arith.truncf %15 : vector<128x128xf32> to vector<128x128xbf16>
    %c0_11 = arith.constant 0 : index
    %c0_12 = arith.constant 0 : index
    %17 = vector.load %arg6[%c0_11, %c0_12] : memref<128x128xbf16, #tpu.memory_space<vmem>>, vector<128x128xbf16>
    %cst_13 = arith.constant dense<0.000000e+00> : vector<128x128xf32>
    %18 = tpu.matmul %16, %17, %cst_13 {dimension_numbers = #tpu.dot_dimension_numbers<[1], [0], [0], [1], [0, 0, 1, 1], [], []>} : vector<128x128xbf16>, vector<128x128xbf16>, vector<128x128xf32> -> vector<128x128xf32>
    %19 = vector.broadcast %1 : vector<128x1xf32> to vector<128x128xf32>
    %20 = arith.mulf %19, %18 : vector<128x128xf32>
    %21 = arith.truncf %20 : vector<128x128xf32> to vector<128x128xbf16>
    %cst_14 = arith.constant dense<0.000000e+00> : vector<128x128xf32>
    %22 = tpu.matmul %0, %21, %cst_14 {dimension_numbers = #tpu.dot_dimension_numbers<[1], [0], [0], [1], [0, 0, 1, 1], [], []>} : vector<128x128xbf16>, vector<128x128xbf16>, vector<128x128xf32> -> vector<128x128xf32>
    %23 = vector.broadcast %1 : vector<128x1xf32> to vector<128x128xf32>
    %24 = arith.mulf %23, %22 : vector<128x128xf32>
    %c0_15 = arith.constant 0 : index
    %c0_16 = arith.constant 0 : index
    %25 = vector.load %arg7[%c0_15, %c0_16] : memref<1x128xf32, #tpu.memory_space<vmem>>, vector<1x128xf32>
    %26 = vector.broadcast %25 : vector<1x128xf32> to vector<128x128xf32>
    %27 = arith.addf %24, %26 : vector<128x128xf32>
    %cst_17 = arith.constant 0.000000e+00 : f32
    %28 = vector.broadcast %cst_17 : f32 to vector<128x128xf32>
    %29 = arith.maximumf %27, %28 : vector<128x128xf32>
    %30 = arith.truncf %29 : vector<128x128xf32> to vector<128x128xbf16>
    %c0_18 = arith.constant 0 : index
    %c0_19 = arith.constant 0 : index
    %31 = vector.load %arg8[%c0_18, %c0_19] : memref<128x128xbf16, #tpu.memory_space<vmem>>, vector<128x128xbf16>
    %cst_20 = arith.constant dense<0.000000e+00> : vector<128x128xf32>
    %32 = tpu.matmul %30, %31, %cst_20 {dimension_numbers = #tpu.dot_dimension_numbers<[1], [0], [0], [1], [0, 0, 1, 1], [], []>} : vector<128x128xbf16>, vector<128x128xbf16>, vector<128x128xf32> -> vector<128x128xf32>
    %33 = vector.broadcast %1 : vector<128x1xf32> to vector<128x128xf32>
    %34 = arith.mulf %33, %32 : vector<128x128xf32>
    %35 = arith.truncf %34 : vector<128x128xf32> to vector<128x128xbf16>
    %cst_21 = arith.constant dense<0.000000e+00> : vector<128x128xf32>
    %36 = tpu.matmul %0, %35, %cst_21 {dimension_numbers = #tpu.dot_dimension_numbers<[1], [0], [0], [1], [0, 0, 1, 1], [], []>} : vector<128x128xbf16>, vector<128x128xbf16>, vector<128x128xf32> -> vector<128x128xf32>
    %37 = vector.broadcast %1 : vector<128x1xf32> to vector<128x128xf32>
    %38 = arith.mulf %37, %36 : vector<128x128xf32>
    %c0_22 = arith.constant 0 : index
    %c0_23 = arith.constant 0 : index
    %39 = vector.load %arg9[%c0_22, %c0_23] : memref<1x128xf32, #tpu.memory_space<vmem>>, vector<1x128xf32>
    %40 = vector.broadcast %39 : vector<1x128xf32> to vector<128x128xf32>
    %41 = arith.addf %38, %40 : vector<128x128xf32>
    %42 = arith.truncf %41 : vector<128x128xf32> to vector<128x128xbf16>
    %c0_24 = arith.constant 0 : index
    %c0_25 = arith.constant 0 : index
    %43 = vector.load %arg3[%c0_24, %c0_25] : memref<8x128xbf16, #tpu.memory_space<vmem>>, vector<8x128xbf16>
    %cst_26 = arith.constant dense<0.000000e+00> : vector<8x128xf32>
    %44 = tpu.matmul %43, %42, %cst_26 {dimension_numbers = #tpu.dot_dimension_numbers<[1], [0], [0], [1], [0, 0, 1, 1], [], []>} : vector<8x128xbf16>, vector<128x128xbf16>, vector<8x128xf32> -> vector<8x128xf32>
    %45 = arith.truncf %44 : vector<8x128xf32> to vector<8x128xbf16>
    %c0_27 = arith.constant 0 : index
    %c0_28 = arith.constant 0 : index
    %46 = vector.load %arg10[%c0_27, %c0_28] : memref<128x128xbf16, #tpu.memory_space<vmem>>, vector<128x128xbf16>
    %cst_29 = arith.constant dense<0.000000e+00> : vector<8x128xf32>
    %47 = tpu.matmul %45, %46, %cst_29 {dimension_numbers = #tpu.dot_dimension_numbers<[1], [0], [0], [1], [0, 0, 1, 1], [], []>} : vector<8x128xbf16>, vector<128x128xbf16>, vector<8x128xf32> -> vector<8x128xf32>
    %c0_30 = arith.constant 0 : index
    %c0_31 = arith.constant 0 : index
    %48 = vector.load %arg11[%c0_30, %c0_31] : memref<1x128xf32, #tpu.memory_space<vmem>>, vector<1x128xf32>
    %49 = vector.broadcast %48 : vector<1x128xf32> to vector<8x128xf32>
    %50 = arith.addf %47, %49 : vector<8x128xf32>
    %c0_32 = arith.constant 0 : index
    %c0_33 = arith.constant 0 : index
    %51 = vector.load %arg12[%c0_32, %c0_33] : memref<8x128xf32, #tpu.memory_space<vmem>>, vector<8x128xf32>
    tpu.vector_store %arg12[%c0_32, %c0_33], %50 {strides = array<i32>} : memref<8x128xf32, #tpu.memory_space<vmem>>, vector<8x128xf32>,
    return
  }
}

</mosaic_0001>

<llo_original>
// kernel: gcn_forward.1
$region0: #{gcn_forward.1}
  #allocation0 [shape = 'u32[]', space=smem, size = 0x4, offset = 0x4, fixed_abs, tag = 'smem constant byte address 0x4 - core index']
  #allocation1 [shape = 'u32[144,128]{1,0:T(1,128)}', space=vmem, size = 0x12000, scoped, tag = 'internal scratch']
  %s0 = inlined_call_operand.vmem [shape: bf16[128,128], index: 0, kind: input, shape index: {}]
  %s1 = inlined_call_operand.vmem [shape: f32[128,1], index: 1, kind: input, shape index: {}]
  %s2 = inlined_call_operand.vmem [shape: bf16[128,128], index: 2, kind: input, shape index: {}]
  %s3 = inlined_call_operand.vmem [shape: bf16[8,128], index: 3, kind: input, shape index: {}]
  %s4 = inlined_call_operand.vmem [shape: bf16[128,128], index: 4, kind: input, shape index: {}]
  %s5 = inlined_call_operand.vmem [shape: f32[1,128], index: 5, kind: input, shape index: {}]
  %s6 = inlined_call_operand.vmem [shape: bf16[128,128], index: 6, kind: input, shape index: {}]
  %s7 = inlined_call_operand.vmem [shape: f32[1,128], index: 7, kind: input, shape index: {}]
  %s8 = inlined_call_operand.vmem [shape: bf16[128,128], index: 8, kind: input, shape index: {}]
  %s9 = inlined_call_operand.vmem [shape: f32[1,128], index: 9, kind: input, shape index: {}]
  %s10 = inlined_call_operand.vmem [shape: bf16[128,128], index: 10, kind: input, shape index: {}]
  %s11 = inlined_call_operand.vmem [shape: f32[1,128], index: 11, kind: input, shape index: {}]
  %s12 = inlined_call_operand.vmem [shape: f32[8,128], index: 12, kind: output, shape index: {}]
  %s13 = sld [smem:[#allocation0]]
  $region58: #{gcn_forward.1} parent=0
    _
  %s15 = ssub.s32 1, %s13
  %s16 = scalar_select 0, %s15, %s13
  // Predicated region
  $region2: #{gcn_forward.1} parent=0 // pred_check
    _
  $region3: #{gcn_forward.1} parent=0 // pred_check_branch
    %18 = sbr.rel (0) target = $region5
  $region4: #{gcn_forward.1} parent=0 // pred_region
    _
  $region5: #{gcn_forward.1} parent=0 // pred_fallthru
    _
  // Predicated region
  $region6: #{gcn_forward.1} parent=0 // pred_check
    _
  $region7: #{gcn_forward.1} parent=0 // pred_check_branch
    %20 = sbr.rel (0) target = $region9
  $region8: #{gcn_forward.1} parent=0 // pred_region
    _
  $region9: #{gcn_forward.1} parent=0 // pred_fallthru
    _
  // Predicated region
  $region10: #{gcn_forward.1} parent=0 // pred_check
    _
  $region11: #{gcn_forward.1} parent=0 // pred_check_branch
    %22 = sbr.rel (0) target = $region13
  $region12: #{gcn_forward.1} parent=0 // pred_region
    _
  $region13: #{gcn_forward.1} parent=0 // pred_fallthru
    _
  // Predicated region
  $region14: #{gcn_forward.1} parent=0 // pred_check
    _
  $region15: #{gcn_forward.1} parent=0 // pred_check_branch
    %24 = sbr.rel (0) target = $region17
  $region16: #{gcn_forward.1} parent=0 // pred_region
    _
  $region17: #{gcn_forward.1} parent=0 // pred_fallthru
    _
  // Predicated region
  $region18: #{gcn_forward.1} parent=0 // pred_check
    _
  $region19: #{gcn_forward.1} parent=0 // pred_check_branch
    %26 = sbr.rel (0) target = $region21
  $region20: #{gcn_forward.1} parent=0 // pred_region
    _
  $region21: #{gcn_forward.1} parent=0 // pred_fallthru
    _
  // Predicated region
  $region22: #{gcn_forward.1} parent=0 // pred_check
    _
  $region23: #{gcn_forward.1} parent=0 // pred_check_branch
    %28 = sbr.rel (0) target = $region25
  $region24: #{gcn_forward.1} parent=0 // pred_region
    _
  $region25: #{gcn_forward.1} parent=0 // pred_fallthru
    _
  // Predicated region
  $region26: #{gcn_forward.1} parent=0 // pred_check
    _
  $region27: #{gcn_forward.1} parent=0 // pred_check_branch
    %30 = sbr.rel (0) target = $region29
  $region28: #{gcn_forward.1} parent=0 // pred_region
    _
  $region29: #{gcn_forward.1} parent=0 // pred_fallthru
    _
  // Predicated region
  $region30: #{gcn_forward.1} parent=0 // pred_check
    _
  $region31: #{gcn_forward.1} parent=0 // pred_check_branch
    %32 = sbr.rel (0) target = $region33
  $region32: #{gcn_forward.1} parent=0 // pred_region
    _
  $region33: #{gcn_forward.1} parent=0 // pred_fallthru
    _
  // Predicated region
  $region34: #{gcn_forward.1} parent=0 // pred_check
    _
  $region35: #{gcn_forward.1} parent=0 // pred_check_branch
    %34 = sbr.rel (0) target = $region37
  $region36: #{gcn_forward.1} parent=0 // pred_region
    _
  $region37: #{gcn_forward.1} parent=0 // pred_fallthru
    _
  // Predicated region
  $region38: #{gcn_forward.1} parent=0 // pred_check
    _
  $region39: #{gcn_forward.1} parent=0 // pred_check_branch
    %36 = sbr.rel (0) target = $region41
  $region40: #{gcn_forward.1} parent=0 // pred_region
    _
  $region41: #{gcn_forward.1} parent=0 // pred_fallthru
    _
  // Predicated region
  $region42: #{gcn_forward.1} parent=0 // pred_check
    _
  $region43: #{gcn_forward.1} parent=0 // pred_check_branch
    %38 = sbr.rel (0) target = $region45
  $region44: #{gcn_forward.1} parent=0 // pred_region
    _
  $region45: #{gcn_forward.1} parent=0 // pred_fallthru
    _
  // Predicated region
  $region46: #{gcn_forward.1} parent=0 // pred_check
    _
  $region47: #{gcn_forward.1} parent=0 // pred_check_branch
    %40 = sbr.rel (0) target = $region49
  $region48: #{gcn_forward.1} parent=0 // pred_region
    _
  $region49: #{gcn_forward.1} parent=0 // pred_fallthru
    _
  %v42 = vld [vmem:[%s0] sm:$0xf]
  %v43 = vld [vmem:[%s0 + $0x4] sm:$0xf]
  %v44 = vld [vmem:[%s0 + $0x8] sm:$0xf]
  %v45 = vld [vmem:[%s0 + $0xc] sm:$0xf]
  %v46 = vld [vmem:[%s0 + $0x10] sm:$0xf]
  %v47 = vld [vmem:[%s0 + $0x14] sm:$0xf]
  %v48 = vld [vmem:[%s0 + $0x18] sm:$0xf]
  %v49 = vld [vmem:[%s0 + $0x1c] sm:$0xf]
  %v50 = vld [vmem:[%s0 + $0x20] sm:$0xf]
  %v51 = vld [vmem:[%s0 + $0x24] sm:$0xf]
  %v52 = vld [vmem:[%s0 + $0x28] sm:$0xf]
  %v53 = vld [vmem:[%s0 + $0x2c] sm:$0xf]
  %v54 = vld [vmem:[%s0 + $0x30] sm:$0xf]
  %v55 = vld [vmem:[%s0 + $0x34] sm:$0xf]
  %v56 = vld [vmem:[%s0 + $0x38] sm:$0xf]
  %v57 = vld [vmem:[%s0 + $0x3c] sm:$0xf]
  %v58 = vld [vmem:[%s1] sm:$0xff]
  %v59 = vld [vmem:[%s1 + $0x8] sm:$0xff]
  %v60 = vld [vmem:[%s1 + $0x10] sm:$0xff]
  %v61 = vld [vmem:[%s1 + $0x18] sm:$0xff]
  %v62 = vld [vmem:[%s1 + $0x20] sm:$0xff]
  %v63 = vld [vmem:[%s1 + $0x28] sm:$0xff]
  %v64 = vld [vmem:[%s1 + $0x30] sm:$0xff]
  %v65 = vld [vmem:[%s1 + $0x38] sm:$0xff]
  %v66 = vld [vmem:[%s1 + $0x40] sm:$0xff]
  %v67 = vld [vmem:[%s1 + $0x48] sm:$0xff]
  %v68 = vld [vmem:[%s1 + $0x50] sm:$0xff]
  %v69 = vld [vmem:[%s1 + $0x58] sm:$0xff]
  %v70 = vld [vmem:[%s1 + $0x60] sm:$0xff]
  %v71 = vld [vmem:[%s1 + $0x68] sm:$0xff]
  %v72 = vld [vmem:[%s1 + $0x70] sm:$0xff]
  %v73 = vld [vmem:[%s1 + $0x78] sm:$0xff]
  %v74 = vld [vmem:[%s2] sm:$0xf]
  %v75 = vld [vmem:[%s2 + $0x4] sm:$0xf]
  %v76 = vld [vmem:[%s2 + $0x8] sm:$0xf]
  %v77 = vld [vmem:[%s2 + $0xc] sm:$0xf]
  %v78 = vld [vmem:[%s2 + $0x10] sm:$0xf]
  %v79 = vld [vmem:[%s2 + $0x14] sm:$0xf]
  %v80 = vld [vmem:[%s2 + $0x18] sm:$0xf]
  %v81 = vld [vmem:[%s2 + $0x1c] sm:$0xf]
  %v82 = vld [vmem:[%s2 + $0x20] sm:$0xf]
  %v83 = vld [vmem:[%s2 + $0x24] sm:$0xf]
  %v84 = vld [vmem:[%s2 + $0x28] sm:$0xf]
  %v85 = vld [vmem:[%s2 + $0x2c] sm:$0xf]
  %v86 = vld [vmem:[%s2 + $0x30] sm:$0xf]
  %v87 = vld [vmem:[%s2 + $0x34] sm:$0xf]
  %v88 = vld [vmem:[%s2 + $0x38] sm:$0xf]
  %v89 = vld [vmem:[%s2 + $0x3c] sm:$0xf]
  %v90 = vld [vmem:[%s4] sm:$0xf]
  %v91 = vld [vmem:[%s4 + $0x4] sm:$0xf]
  %v92 = vld [vmem:[%s4 + $0x8] sm:$0xf]
  %v93 = vld [vmem:[%s4 + $0xc] sm:$0xf]
  %v94 = vld [vmem:[%s4 + $0x10] sm:$0xf]
  %v95 = vld [vmem:[%s4 + $0x14] sm:$0xf]
  %v96 = vld [vmem:[%s4 + $0x18] sm:$0xf]
  %v97 = vld [vmem:[%s4 + $0x1c] sm:$0xf]
  %v98 = vld [vmem:[%s4 + $0x20] sm:$0xf]
  %v99 = vld [vmem:[%s4 + $0x24] sm:$0xf]
  %v100 = vld [vmem:[%s4 + $0x28] sm:$0xf]
  %v101 = vld [vmem:[%s4 + $0x2c] sm:$0xf]
  %v102 = vld [vmem:[%s4 + $0x30] sm:$0xf]
  %v103 = vld [vmem:[%s4 + $0x34] sm:$0xf]
  %v104 = vld [vmem:[%s4 + $0x38] sm:$0xf]
  %v105 = vld [vmem:[%s4 + $0x3c] sm:$0xf]
  %v122 = vunpack.c.l.b16 %v74
  %v123 = vunpack.c.l.b16 %v75
  %v124 = vunpack.c.l.b16 %v76
  %v125 = vunpack.c.l.b16 %v77
  %v126 = vunpack.c.l.b16 %v78
  %v127 = vunpack.c.l.b16 %v79
  %v128 = vunpack.c.l.b16 %v80
  %v129 = vunpack.c.l.b16 %v81
  %v130 = vunpack.c.l.b16 %v82
  %v131 = vunpack.c.l.b16 %v83
  %v132 = vunpack.c.l.b16 %v84
  %v133 = vunpack.c.l.b16 %v85
  %v134 = vunpack.c.l.b16 %v86
  %v135 = vunpack.c.l.b16 %v87
  %v136 = vunpack.c.l.b16 %v88
  %v137 = vunpack.c.l.b16 %v89
  %v138 = vpack.c.b16 %v123, %v122
  %v139 = vpack.c.b16 %v125, %v124
  %v140 = vpack.c.b16 %v127, %v126
  %v141 = vpack.c.b16 %v129, %v128
  %v142 = vpack.c.b16 %v131, %v130
  %v143 = vpack.c.b16 %v133, %v132
  %v144 = vpack.c.b16 %v135, %v134
  %v145 = vpack.c.b16 %v137, %v136
  %v170 = vunpack.c.l.b16 %v90
  %v171 = vunpack.c.l.b16 %v91
  %v172 = vunpack.c.l.b16 %v92
  %v173 = vunpack.c.l.b16 %v93
  %v174 = vunpack.c.l.b16 %v94
  %v175 = vunpack.c.l.b16 %v95
  %v176 = vunpack.c.l.b16 %v96
  %v177 = vunpack.c.l.b16 %v97
  %v178 = vunpack.c.l.b16 %v98
  %v179 = vunpack.c.l.b16 %v99
  %v180 = vunpack.c.l.b16 %v100
  %v181 = vunpack.c.l.b16 %v101
  %v182 = vunpack.c.l.b16 %v102
  %v183 = vunpack.c.l.b16 %v103
  %v184 = vunpack.c.l.b16 %v104
  %v185 = vunpack.c.l.b16 %v105
  %v186 = vpack.c.b16 %v171, %v170
  %v187 = vpack.c.b16 %v173, %v172
  %v188 = vpack.c.b16 %v175, %v174
  %v189 = vpack.c.b16 %v177, %v176
  %v190 = vpack.c.b16 %v179, %v178
  %v191 = vpack.c.b16 %v181, %v180
  %v192 = vpack.c.b16 %v183, %v182
  %v193 = vpack.c.b16 %v185, %v184
  %202 = vmatprep.subr.bf16.mxu0 0
  %203 = vmatpush1.bf16.msra.mxu0 %v193
  %204 = vmatprep.subr.bf16.mxu0 0
  %205 = vmatpush1.bf16.msra.mxu0 %v192
  %206 = vmatprep.subr.bf16.mxu0 0
  %207 = vmatpush1.bf16.msra.mxu0 %v191
  %208 = vmatprep.subr.bf16.mxu0 0
  %209 = vmatpush1.bf16.msra.mxu0 %v190
  %210 = vmatprep.subr.bf16.mxu0 0
  %211 = vmatpush1.bf16.msra.mxu0 %v189
  %212 = vmatprep.subr.bf16.mxu0 0
  %213 = vmatpush1.bf16.msra.mxu0 %v188
  %214 = vmatprep.subr.bf16.mxu0 0
  %215 = vmatpush1.bf16.msra.mxu0 %v187
  %216 = vmatprep.subr.bf16.mxu0 0
  %217 = vmatpush1.bf16.msra.mxu0 %v186
  %218 = vmatprep.subr.bf16.mxu0 0
  %219 = vmatpush2.bf16.msra.mxu0 0
  %220 = vmatprep.subr.bf16.mxu0 0
  %221 = vmatpush2.bf16.msra.mxu0 0
  %222 = vmatprep.subr.bf16.mxu0 0
  %223 = vmatpush2.bf16.msra.mxu0 0
  %224 = vmatprep.subr.bf16.mxu0 0
  %225 = vmatpush2.bf16.msra.mxu0 0
  %226 = vmatprep.subr.bf16.mxu0 0
  %227 = vmatpush2.bf16.msra.mxu0 0
  %228 = vmatprep.subr.bf16.mxu0 0
  %229 = vmatpush2.bf16.msra.mxu0 0
  %230 = vmatprep.subr.bf16.mxu0 0
  %231 = vmatpush2.bf16.msra.mxu0 0
  %232 = vmatprep.subr.bf16.mxu0 0
  %233 = vmatpush2.bf16.msra.mxu0 0
  %234 = vmatprep.mubr.bf16.mxu0 0
  %235 = vmatmul.mubr.bf16.gmra.mxu0 %v138
  %v236 = vpop.f32.mrf.mxu0
  %v237 = vadd.f32 0.0, %v236
  %v238 = vpop.f32.mrf.mxu0
  %v239 = vpop.f32.mrf.mxu0
  %v240 = vadd.f32 0.0, %v239
  %v241 = vpop.f32.mrf.mxu0
  %242 = vmatprep.mubr.bf16.mxu0 0
  %243 = vmatmul.mubr.bf16.gmra.mxu0 %v139
  %v244 = vpop.f32.mrf.mxu0
  %v245 = vadd.f32 0.0, %v244
  %v246 = vpop.f32.mrf.mxu0
  %v247 = vpop.f32.mrf.mxu0
  %v248 = vadd.f32 0.0, %v247
  %v249 = vpop.f32.mrf.mxu0
  %250 = vmatprep.mubr.bf16.mxu0 0
  %251 = vmatmul.mubr.bf16.gmra.mxu0 %v140
  %v252 = vpop.f32.mrf.mxu0
  %v253 = vadd.f32 0.0, %v252
  %v254 = vpop.f32.mrf.mxu0
  %v255 = vpop.f32.mrf.mxu0
  %v256 = vadd.f32 0.0, %v255
  %v257 = vpop.f32.mrf.mxu0
  %258 = vmatprep.mubr.bf16.mxu0 0
  %259 = vmatmul.mubr.bf16.gmra.mxu0 %v141
  %v260 = vpop.f32.mrf.mxu0
  %v261 = vadd.f32 0.0, %v260
  %v262 = vpop.f32.mrf.mxu0
  %v263 = vpop.f32.mrf.mxu0
  %v264 = vadd.f32 0.0, %v263
  %v265 = vpop.f32.mrf.mxu0
  %266 = vmatprep.mubr.bf16.mxu0 0
  %267 = vmatmul.mubr.bf16.gmra.mxu0 %v142
  %v268 = vpop.f32.mrf.mxu0
  %v269 = vadd.f32 0.0, %v268
  %v270 = vpop.f32.mrf.mxu0
  %v271 = vpop.f32.mrf.mxu0
  %v272 = vadd.f32 0.0, %v271
  %v273 = vpop.f32.mrf.mxu0
  %274 = vmatprep.mubr.bf16.mxu0 0
  %275 = vmatmul.mubr.bf16.gmra.mxu0 %v143
  %v276 = vpop.f32.mrf.mxu0
  %v277 = vadd.f32 0.0, %v276
  %v278 = vpop.f32.mrf.mxu0
  %v279 = vpop.f32.mrf.mxu0
  %v280 = vadd.f32 0.0, %v279
  %v281 = vpop.f32.mrf.mxu0
  %282 = vmatprep.mubr.bf16.mxu0 0
  %283 = vmatmul.mubr.bf16.gmra.mxu0 %v144
  %v284 = vpop.f32.mrf.mxu0
  %v285 = vadd.f32 0.0, %v284
  %v286 = vpop.f32.mrf.mxu0
  %v287 = vpop.f32.mrf.mxu0
  %v288 = vadd.f32 0.0, %v287
  %v289 = vpop.f32.mrf.mxu0
  %290 = vmatprep.mubr.bf16.mxu0 0
  %291 = vmatmul.mubr.bf16.gmra.mxu0 %v145
  %v292 = vpop.f32.mrf.mxu0
  %v293 = vadd.f32 0.0, %v292
  %v294 = vpop.f32.mrf.mxu0
  %v295 = vpop.f32.mrf.mxu0
  %v296 = vadd.f32 0.0, %v295
  %v297 = vpop.f32.mrf.mxu0
  %298 = vdwg.mxu0
  %300 = vset.pattern.permute.xlu0 0
  %301 = vperm.xlu0 %300, %v58
  %v302 = vpop.permute.xlu0 %301
  %305 = vset.pattern.permute.xlu0 0
  %306 = vperm.xlu0 %305, %v59
  %v307 = vpop.permute.xlu0 %306
  %310 = vset.pattern.permute.xlu0 0
  %311 = vperm.xlu0 %310, %v60
  %v312 = vpop.permute.xlu0 %311
  %315 = vset.pattern.permute.xlu0 0
  %316 = vperm.xlu0 %315, %v61
  %v317 = vpop.permute.xlu0 %316
  %320 = vset.pattern.permute.xlu0 0
  %321 = vperm.xlu0 %320, %v62
  %v322 = vpop.permute.xlu0 %321
  %325 = vset.pattern.permute.xlu0 0
  %326 = vperm.xlu0 %325, %v63
  %v327 = vpop.permute.xlu0 %326
  %330 = vset.pattern.permute.xlu0 0
  %331 = vperm.xlu0 %330, %v64
  %v332 = vpop.permute.xlu0 %331
  %335 = vset.pattern.permute.xlu0 0
  %336 = vperm.xlu0 %335, %v65
  %v337 = vpop.permute.xlu0 %336
  %340 = vset.pattern.permute.xlu0 0
  %341 = vperm.xlu0 %340, %v66
  %v342 = vpop.permute.xlu0 %341
  %345 = vset.pattern.permute.xlu0 0
  %346 = vperm.xlu0 %345, %v67
  %v347 = vpop.permute.xlu0 %346
  %350 = vset.pattern.permute.xlu0 0
  %351 = vperm.xlu0 %350, %v68
  %v352 = vpop.permute.xlu0 %351
  %355 = vset.pattern.permute.xlu0 0
  %356 = vperm.xlu0 %355, %v69
  %v357 = vpop.permute.xlu0 %356
  %360 = vset.pattern.permute.xlu0 0
  %361 = vperm.xlu0 %360, %v70
  %v362 = vpop.permute.xlu0 %361
  %365 = vset.pattern.permute.xlu0 0
  %366 = vperm.xlu0 %365, %v71
  %v367 = vpop.permute.xlu0 %366
  %370 = vset.pattern.permute.xlu0 0
  %371 = vperm.xlu0 %370, %v72
  %v372 = vpop.permute.xlu0 %371
  %375 = vset.pattern.permute.xlu0 0
  %376 = vperm.xlu0 %375, %v73
  %v377 = vpop.permute.xlu0 %376
  %v379 = vmul.f32 %v302, %v237
  %v380 = vmul.f32 %v307, %v240
  %v381 = vmul.f32 %v312, %v245
  %v382 = vmul.f32 %v317, %v248
  %v383 = vmul.f32 %v322, %v253
  %v384 = vmul.f32 %v327, %v256
  %v385 = vmul.f32 %v332, %v261
  %v386 = vmul.f32 %v337, %v264
  %v387 = vmul.f32 %v342, %v269
  %v388 = vmul.f32 %v347, %v272
  %v389 = vmul.f32 %v352, %v277
  %v390 = vmul.f32 %v357, %v280
  %v391 = vmul.f32 %v362, %v285
  %v392 = vmul.f32 %v367, %v288
  %v393 = vmul.f32 %v372, %v293
  %v394 = vmul.f32 %v377, %v296
  %v395 = vpack.c.bf16 %v380, %v379
  %v396 = vpack.c.bf16 %v382, %v381
  %v397 = vpack.c.bf16 %v384, %v383
  %v398 = vpack.c.bf16 %v386, %v385
  %v399 = vpack.c.bf16 %v388, %v387
  %v400 = vpack.c.bf16 %v390, %v389
  %v401 = vpack.c.bf16 %v392, %v391
  %v402 = vpack.c.bf16 %v394, %v393
  %v419 = vunpack.c.l.b16 %v42
  %v420 = vunpack.c.l.b16 %v43
  %v421 = vunpack.c.l.b16 %v44
  %v422 = vunpack.c.l.b16 %v45
  %v423 = vunpack.c.l.b16 %v46
  %v424 = vunpack.c.l.b16 %v47
  %v425 = vunpack.c.l.b16 %v48
  %v426 = vunpack.c.l.b16 %v49
  %v427 = vunpack.c.l.b16 %v50
  %v428 = vunpack.c.l.b16 %v51
  %v429 = vunpack.c.l.b16 %v52
  %v430 = vunpack.c.l.b16 %v53
  %v431 = vunpack.c.l.b16 %v54
  %v432 = vunpack.c.l.b16 %v55
  %v433 = vunpack.c.l.b16 %v56
  %v434 = vunpack.c.l.b16 %v57
  %v435 = vpack.c.b16 %v420, %v419
  %v436 = vpack.c.b16 %v422, %v421
  %v437 = vpack.c.b16 %v424, %v423
  %v438 = vpack.c.b16 %v426, %v425
  %v439 = vpack.c.b16 %v428, %v427
  %v440 = vpack.c.b16 %v430, %v429
  %v441 = vpack.c.b16 %v432, %v431
  %v442 = vpack.c.b16 %v434, %v433
  %451 = vmatprep.subr.bf16.mxu0 0
  %452 = vmatpush1.bf16.msra.mxu0 %v402
  %453 = vmatprep.subr.bf16.mxu0 0
  %454 = vmatpush1.bf16.msra.mxu0 %v401
  %455 = vmatprep.subr.bf16.mxu0 0
  %456 = vmatpush1.bf16.msra.mxu0 %v400
  %457 = vmatprep.subr.bf16.mxu0 0
  %458 = vmatpush1.bf16.msra.mxu0 %v399
  %459 = vmatprep.subr.bf16.mxu0 0
  %460 = vmatpush1.bf16.msra.mxu0 %v398
  %461 = vmatprep.subr.bf16.mxu0 0
  %462 = vmatpush1.bf16.msra.mxu0 %v397
  %463 = vmatprep.subr.bf16.mxu0 0
  %464 = vmatpush1.bf16.msra.mxu0 %v396
  %465 = vmatprep.subr.bf16.mxu0 0
  %466 = vmatpush1.bf16.msra.mxu0 %v395
  %467 = vmatprep.subr.bf16.mxu0 0
  %468 = vmatpush2.bf16.msra.mxu0 0
  %469 = vmatprep.subr.bf16.mxu0 0
  %470 = vmatpush2.bf16.msra.mxu0 0
  %471 = vmatprep.subr.bf16.mxu0 0
  %472 = vmatpush2.bf16.msra.mxu0 0
  %473 = vmatprep.subr.bf16.mxu0 0
  %474 = vmatpush2.bf16.msra.mxu0 0
  %475 = vmatprep.subr.bf16.mxu0 0
  %476 = vmatpush2.bf16.msra.mxu0 0
  %477 = vmatprep.subr.bf16.mxu0 0
  %478 = vmatpush2.bf16.msra.mxu0 0
  %479 = vmatprep.subr.bf16.mxu0 0
  %480 = vmatpush2.bf16.msra.mxu0 0
  %481 = vmatprep.subr.bf16.mxu0 0
  %482 = vmatpush2.bf16.msra.mxu0 0
  %483 = vmatprep.mubr.bf16.mxu0 0
  %484 = vmatmul.mubr.bf16.gmra.mxu0 %v435
  %v485 = vpop.f32.mrf.mxu0
  %v486 = vadd.f32 0.0, %v485
  %v487 = vpop.f32.mrf.mxu0
  %v488 = vpop.f32.mrf.mxu0
  %v489 = vadd.f32 0.0, %v488
  %v490 = vpop.f32.mrf.mxu0
  %491 = vmatprep.mubr.bf16.mxu0 0
  %492 = vmatmul.mubr.bf16.gmra.mxu0 %v436
  %v493 = vpop.f32.mrf.mxu0
  %v494 = vadd.f32 0.0, %v493
  %v495 = vpop.f32.mrf.mxu0
  %v496 = vpop.f32.mrf.mxu0
  %v497 = vadd.f32 0.0, %v496
  %v498 = vpop.f32.mrf.mxu0
  %499 = vmatprep.mubr.bf16.mxu0 0
  %500 = vmatmul.mubr.bf16.gmra.mxu0 %v437
  %v501 = vpop.f32.mrf.mxu0
  %v502 = vadd.f32 0.0, %v501
  %v503 = vpop.f32.mrf.mxu0
  %v504 = vpop.f32.mrf.mxu0
  %v505 = vadd.f32 0.0, %v504
  %v506 = vpop.f32.mrf.mxu0
  %507 = vmatprep.mubr.bf16.mxu0 0
  %508 = vmatmul.mubr.bf16.gmra.mxu0 %v438
  %v509 = vpop.f32.mrf.mxu0
  %v510 = vadd.f32 0.0, %v509
  %v511 = vpop.f32.mrf.mxu0
  %v512 = vpop.f32.mrf.mxu0
  %v513 = vadd.f32 0.0, %v512
  %v514 = vpop.f32.mrf.mxu0
  %515 = vmatprep.mubr.bf16.mxu0 0
  %516 = vmatmul.mubr.bf16.gmra.mxu0 %v439
  %v517 = vpop.f32.mrf.mxu0
  %v518 = vadd.f32 0.0, %v517
  %v519 = vpop.f32.mrf.mxu0
  %v520 = vpop.f32.mrf.mxu0
  %v521 = vadd.f32 0.0, %v520
  %v522 = vpop.f32.mrf.mxu0
  %523 = vmatprep.mubr.bf16.mxu0 0
  %524 = vmatmul.mubr.bf16.gmra.mxu0 %v440
  %v525 = vpop.f32.mrf.mxu0
  %v526 = vadd.f32 0.0, %v525
  %v527 = vpop.f32.mrf.mxu0
  %v528 = vpop.f32.mrf.mxu0
  %v529 = vadd.f32 0.0, %v528
  %v530 = vpop.f32.mrf.mxu0
  %531 = vmatprep.mubr.bf16.mxu0 0
  %532 = vmatmul.mubr.bf16.gmra.mxu0 %v441
  %v533 = vpop.f32.mrf.mxu0
  %v534 = vadd.f32 0.0, %v533
  %v535 = vpop.f32.mrf.mxu0
  %v536 = vpop.f32.mrf.mxu0
  %v537 = vadd.f32 0.0, %v536
  %v538 = vpop.f32.mrf.mxu0
  %539 = vmatprep.mubr.bf16.mxu0 0
  %540 = vmatmul.mubr.bf16.gmra.mxu0 %v442
  %v541 = vpop.f32.mrf.mxu0
  %v542 = vadd.f32 0.0, %v541
  %v543 = vpop.f32.mrf.mxu0
  %v544 = vpop.f32.mrf.mxu0
  %v545 = vadd.f32 0.0, %v544
  %v546 = vpop.f32.mrf.mxu0
  %547 = vdwg.mxu0
  %v548 = vmul.f32 %v302, %v486
  %v549 = vmul.f32 %v307, %v489
  %v550 = vmul.f32 %v312, %v494
  %v551 = vmul.f32 %v317, %v497
  %v552 = vmul.f32 %v322, %v502
  %v553 = vmul.f32 %v327, %v505
  %v554 = vmul.f32 %v332, %v510
  %v555 = vmul.f32 %v337, %v513
  %v556 = vmul.f32 %v342, %v518
  %v557 = vmul.f32 %v347, %v521
  %v558 = vmul.f32 %v352, %v526
  %v559 = vmul.f32 %v357, %v529
  %v560 = vmul.f32 %v362, %v534
  %v561 = vmul.f32 %v367, %v537
  %v562 = vmul.f32 %v372, %v542
  %v563 = vmul.f32 %v377, %v545
  %v564 = vld [vmem:[%s5] sm:$0x1]
  %v566 = vlaneseq
  %v567 = vshrl.u32 %v566, 7
  %v568 = vsub.s32 0, %v567
  %v569 = vrot.slane %v564, %v568
  %v571 = vadd.f32 %v548, %v569
  %v572 = vadd.f32 %v549, %v569
  %v573 = vadd.f32 %v550, %v569
  %v574 = vadd.f32 %v551, %v569
  %v575 = vadd.f32 %v552, %v569
  %v576 = vadd.f32 %v553, %v569
  %v577 = vadd.f32 %v554, %v569
  %v578 = vadd.f32 %v555, %v569
  %v579 = vadd.f32 %v556, %v569
  %v580 = vadd.f32 %v557, %v569
  %v581 = vadd.f32 %v558, %v569
  %v582 = vadd.f32 %v559, %v569
  %v583 = vadd.f32 %v560, %v569
  %v584 = vadd.f32 %v561, %v569
  %v585 = vadd.f32 %v562, %v569
  %v586 = vadd.f32 %v563, %v569
  %v587 = vmax.f32 %v571, 0.0
  %v588 = vmax.f32 %v572, 0.0
  %v589 = vmax.f32 %v573, 0.0
  %v590 = vmax.f32 %v574, 0.0
  %v591 = vmax.f32 %v575, 0.0
  %v592 = vmax.f32 %v576, 0.0
  %v593 = vmax.f32 %v577, 0.0
  %v594 = vmax.f32 %v578, 0.0
  %v595 = vmax.f32 %v579, 0.0
  %v596 = vmax.f32 %v580, 0.0
  %v597 = vmax.f32 %v581, 0.0
  %v598 = vmax.f32 %v582, 0.0
  %v599 = vmax.f32 %v583, 0.0
  %v600 = vmax.f32 %v584, 0.0
  %v601 = vmax.f32 %v585, 0.0
  %v602 = vmax.f32 %v586, 0.0
  %v603 = vpack.c.bf16 %v588, %v587
  %v604 = vpack.c.bf16 %v590, %v589
  %v605 = vpack.c.bf16 %v592, %v591
  %v606 = vpack.c.bf16 %v594, %v593
  %v607 = vpack.c.bf16 %v596, %v595
  %v608 = vpack.c.bf16 %v598, %v597
  %v609 = vpack.c.bf16 %v600, %v599
  %v610 = vpack.c.bf16 %v602, %v601
  %v611 = vld [vmem:[%s6] sm:$0xf]
  %v612 = vld [vmem:[%s6 + $0x4] sm:$0xf]
  %v613 = vld [vmem:[%s6 + $0x8] sm:$0xf]
  %v614 = vld [vmem:[%s6 + $0xc] sm:$0xf]
  %v615 = vld [vmem:[%s6 + $0x10] sm:$0xf]
  %v616 = vld [vmem:[%s6 + $0x14] sm:$0xf]
  %v617 = vld [vmem:[%s6 + $0x18] sm:$0xf]
  %v618 = vld [vmem:[%s6 + $0x1c] sm:$0xf]
  %v619 = vld [vmem:[%s6 + $0x20] sm:$0xf]
  %v620 = vld [vmem:[%s6 + $0x24] sm:$0xf]
  %v621 = vld [vmem:[%s6 + $0x28] sm:$0xf]
  %v622 = vld [vmem:[%s6 + $0x2c] sm:$0xf]
  %v623 = vld [vmem:[%s6 + $0x30] sm:$0xf]
  %v624 = vld [vmem:[%s6 + $0x34] sm:$0xf]
  %v625 = vld [vmem:[%s6 + $0x38] sm:$0xf]
  %v626 = vld [vmem:[%s6 + $0x3c] sm:$0xf]
  %v643 = vunpack.c.l.b16 %v611
  %v644 = vunpack.c.l.b16 %v612
  %v645 = vunpack.c.l.b16 %v613
  %v646 = vunpack.c.l.b16 %v614
  %v647 = vunpack.c.l.b16 %v615
  %v648 = vunpack.c.l.b16 %v616
  %v649 = vunpack.c.l.b16 %v617
  %v650 = vunpack.c.l.b16 %v618
  %v651 = vunpack.c.l.b16 %v619
  %v652 = vunpack.c.l.b16 %v620
  %v653 = vunpack.c.l.b16 %v621
  %v654 = vunpack.c.l.b16 %v622
  %v655 = vunpack.c.l.b16 %v623
  %v656 = vunpack.c.l.b16 %v624
  %v657 = vunpack.c.l.b16 %v625
  %v658 = vunpack.c.l.b16 %v626
  %v659 = vpack.c.b16 %v644, %v643
  %v660 = vpack.c.b16 %v646, %v645
  %v661 = vpack.c.b16 %v648, %v647
  %v662 = vpack.c.b16 %v650, %v649
  %v663 = vpack.c.b16 %v652, %v651
  %v664 = vpack.c.b16 %v654, %v653
  %v665 = vpack.c.b16 %v656, %v655
  %v666 = vpack.c.b16 %v658, %v657
  %675 = vmatprep.subr.bf16.mxu0 0
  %676 = vmatpush1.bf16.msra.mxu0 %v666
  %677 = vmatprep.subr.bf16.mxu0 0
  %678 = vmatpush1.bf16.msra.mxu0 %v665
  %679 = vmatprep.subr.bf16.mxu0 0
  %680 = vmatpush1.bf16.msra.mxu0 %v664
  %681 = vmatprep.subr.bf16.mxu0 0
  %682 = vmatpush1.bf16.msra.mxu0 %v663
  %683 = vmatprep.subr.bf16.mxu0 0
  %684 = vmatpush1.bf16.msra.mxu0 %v662
  %685 = vmatprep.subr.bf16.mxu0 0
  %686 = vmatpush1.bf16.msra.mxu0 %v661
  %687 = vmatprep.subr.bf16.mxu0 0
  %688 = vmatpush1.bf16.msra.mxu0 %v660
  %689 = vmatprep.subr.bf16.mxu0 0
  %690 = vmatpush1.bf16.msra.mxu0 %v659
  %691 = vmatprep.subr.bf16.mxu0 0
  %692 = vmatpush2.bf16.msra.mxu0 0
  %693 = vmatprep.subr.bf16.mxu0 0
  %694 = vmatpush2.bf16.msra.mxu0 0
  %695 = vmatprep.subr.bf16.mxu0 0
  %696 = vmatpush2.bf16.msra.mxu0 0
  %697 = vmatprep.subr.bf16.mxu0 0
  %698 = vmatpush2.bf16.msra.mxu0 0
  %699 = vmatprep.subr.bf16.mxu0 0
  %700 = vmatpush2.bf16.msra.mxu0 0
  %701 = vmatprep.subr.bf16.mxu0 0
  %702 = vmatpush2.bf16.msra.mxu0 0
  %703 = vmatprep.subr.bf16.mxu0 0
  %704 = vmatpush2.bf16.msra.mxu0 0
  %705 = vmatprep.subr.bf16.mxu0 0
  %706 = vmatpush2.bf16.msra.mxu0 0
  %707 = vmatprep.mubr.bf16.mxu0 0
  %708 = vmatmul.mubr.bf16.gmra.mxu0 %v603
  %v709 = vpop.f32.mrf.mxu0
  %v710 = vadd.f32 0.0, %v709
  %v711 = vpop.f32.mrf.mxu0
  %v712 = vpop.f32.mrf.mxu0
  %v713 = vadd.f32 0.0, %v712
  %v714 = vpop.f32.mrf.mxu0
  %715 = vmatprep.mubr.bf16.mxu0 0
  %716 = vmatmul.mubr.bf16.gmra.mxu0 %v604
  %v717 = vpop.f32.mrf.mxu0
  %v718 = vadd.f32 0.0, %v717
  %v719 = vpop.f32.mrf.mxu0
  %v720 = vpop.f32.mrf.mxu0
  %v721 = vadd.f32 0.0, %v720
  %v722 = vpop.f32.mrf.mxu0
  %723 = vmatprep.mubr.bf16.mxu0 0
  %724 = vmatmul.mubr.bf16.gmra.mxu0 %v605
  %v725 = vpop.f32.mrf.mxu0
  %v726 = vadd.f32 0.0, %v725
  %v727 = vpop.f32.mrf.mxu0
  %v728 = vpop.f32.mrf.mxu0
  %v729 = vadd.f32 0.0, %v728
  %v730 = vpop.f32.mrf.mxu0
  %731 = vmatprep.mubr.bf16.mxu0 0
  %732 = vmatmul.mubr.bf16.gmra.mxu0 %v606
  %v733 = vpop.f32.mrf.mxu0
  %v734 = vadd.f32 0.0, %v733
  %v735 = vpop.f32.mrf.mxu0
  %v736 = vpop.f32.mrf.mxu0
  %v737 = vadd.f32 0.0, %v736
  %v738 = vpop.f32.mrf.mxu0
  %739 = vmatprep.mubr.bf16.mxu0 0
  %740 = vmatmul.mubr.bf16.gmra.mxu0 %v607
  %v741 = vpop.f32.mrf.mxu0
  %v742 = vadd.f32 0.0, %v741
  %v743 = vpop.f32.mrf.mxu0
  %v744 = vpop.f32.mrf.mxu0
  %v745 = vadd.f32 0.0, %v744
  %v746 = vpop.f32.mrf.mxu0
  %747 = vmatprep.mubr.bf16.mxu0 0
  %748 = vmatmul.mubr.bf16.gmra.mxu0 %v608
  %v749 = vpop.f32.mrf.mxu0
  %v750 = vadd.f32 0.0, %v749
  %v751 = vpop.f32.mrf.mxu0
  %v752 = vpop.f32.mrf.mxu0
  %v753 = vadd.f32 0.0, %v752
  %v754 = vpop.f32.mrf.mxu0
  %755 = vmatprep.mubr.bf16.mxu0 0
  %756 = vmatmul.mubr.bf16.gmra.mxu0 %v609
  %v757 = vpop.f32.mrf.mxu0
  %v758 = vadd.f32 0.0, %v757
  %v759 = vpop.f32.mrf.mxu0
  %v760 = vpop.f32.mrf.mxu0
  %v761 = vadd.f32 0.0, %v760
  %v762 = vpop.f32.mrf.mxu0
  %763 = vmatprep.mubr.bf16.mxu0 0
  %764 = vmatmul.mubr.bf16.gmra.mxu0 %v610
  %v765 = vpop.f32.mrf.mxu0
  %v766 = vadd.f32 0.0, %v765
  %v767 = vpop.f32.mrf.mxu0
  %v768 = vpop.f32.mrf.mxu0
  %v769 = vadd.f32 0.0, %v768
  %v770 = vpop.f32.mrf.mxu0
  %771 = vdwg.mxu0
  %v772 = vmul.f32 %v302, %v710
  %v773 = vmul.f32 %v307, %v713
  %v774 = vmul.f32 %v312, %v718
  %v775 = vmul.f32 %v317, %v721
  %v776 = vmul.f32 %v322, %v726
  %v777 = vmul.f32 %v327, %v729
  %v778 = vmul.f32 %v332, %v734
  %v779 = vmul.f32 %v337, %v737
  %v780 = vmul.f32 %v342, %v742
  %v781 = vmul.f32 %v347, %v745
  %v782 = vmul.f32 %v352, %v750
  %v783 = vmul.f32 %v357, %v753
  %v784 = vmul.f32 %v362, %v758
  %v785 = vmul.f32 %v367, %v761
  %v786 = vmul.f32 %v372, %v766
  %v787 = vmul.f32 %v377, %v769
  %v788 = vpack.c.bf16 %v773, %v772
  %v789 = vpack.c.bf16 %v775, %v774
  %v790 = vpack.c.bf16 %v777, %v776
  %v791 = vpack.c.bf16 %v779, %v778
  %v792 = vpack.c.bf16 %v781, %v780
  %v793 = vpack.c.bf16 %v783, %v782
  %v794 = vpack.c.bf16 %v785, %v784
  %v795 = vpack.c.bf16 %v787, %v786
  %796 = vmatprep.subr.bf16.mxu0 0
  %797 = vmatpush1.bf16.msra.mxu0 %v795
  %798 = vmatprep.subr.bf16.mxu0 0
  %799 = vmatpush1.bf16.msra.mxu0 %v794
  %800 = vmatprep.subr.bf16.mxu0 0
  %801 = vmatpush1.bf16.msra.mxu0 %v793
  %802 = vmatprep.subr.bf16.mxu0 0
  %803 = vmatpush1.bf16.msra.mxu0 %v792
  %804 = vmatprep.subr.bf16.mxu0 0
  %805 = vmatpush1.bf16.msra.mxu0 %v791
  %806 = vmatprep.subr.bf16.mxu0 0
  %807 = vmatpush1.bf16.msra.mxu0 %v790
  %808 = vmatprep.subr.bf16.mxu0 0
  %809 = vmatpush1.bf16.msra.mxu0 %v789
  %810 = vmatprep.subr.bf16.mxu0 0
  %811 = vmatpush1.bf16.msra.mxu0 %v788
  %812 = vmatprep.subr.bf16.mxu0 0
  %813 = vmatpush2.bf16.msra.mxu0 0
  %814 = vmatprep.subr.bf16.mxu0 0
  %815 = vmatpush2.bf16.msra.mxu0 0
  %816 = vmatprep.subr.bf16.mxu0 0
  %817 = vmatpush2.bf16.msra.mxu0 0
  %818 = vmatprep.subr.bf16.mxu0 0
  %819 = vmatpush2.bf16.msra.mxu0 0
  %820 = vmatprep.subr.bf16.mxu0 0
  %821 = vmatpush2.bf16.msra.mxu0 0
  %822 = vmatprep.subr.bf16.mxu0 0
  %823 = vmatpush2.bf16.msra.mxu0 0
  %824 = vmatprep.subr.bf16.mxu0 0
  %825 = vmatpush2.bf16.msra.mxu0 0
  %826 = vmatprep.subr.bf16.mxu0 0
  %827 = vmatpush2.bf16.msra.mxu0 0
  %828 = vmatprep.mubr.bf16.mxu0 0
  %829 = vmatmul.mubr.bf16.gmra.mxu0 %v435
  %v830 = vpop.f32.mrf.mxu0
  %v831 = vadd.f32 0.0, %v830
  %v832 = vpop.f32.mrf.mxu0
  %v833 = vpop.f32.mrf.mxu0
  %v834 = vadd.f32 0.0, %v833
  %v835 = vpop.f32.mrf.mxu0
  %836 = vmatprep.mubr.bf16.mxu0 0
  %837 = vmatmul.mubr.bf16.gmra.mxu0 %v436
  %v838 = vpop.f32.mrf.mxu0
  %v839 = vadd.f32 0.0, %v838
  %v840 = vpop.f32.mrf.mxu0
  %v841 = vpop.f32.mrf.mxu0
  %v842 = vadd.f32 0.0, %v841
  %v843 = vpop.f32.mrf.mxu0
  %844 = vmatprep.mubr.bf16.mxu0 0
  %845 = vmatmul.mubr.bf16.gmra.mxu0 %v437
  %v846 = vpop.f32.mrf.mxu0
  %v847 = vadd.f32 0.0, %v846
  %v848 = vpop.f32.mrf.mxu0
  %v849 = vpop.f32.mrf.mxu0
  %v850 = vadd.f32 0.0, %v849
  %v851 = vpop.f32.mrf.mxu0
  %852 = vmatprep.mubr.bf16.mxu0 0
  %853 = vmatmul.mubr.bf16.gmra.mxu0 %v438
  %v854 = vpop.f32.mrf.mxu0
  %v855 = vadd.f32 0.0, %v854
  %v856 = vpop.f32.mrf.mxu0
  %v857 = vpop.f32.mrf.mxu0
  %v858 = vadd.f32 0.0, %v857
  %v859 = vpop.f32.mrf.mxu0
  %860 = vmatprep.mubr.bf16.mxu0 0
  %861 = vmatmul.mubr.bf16.gmra.mxu0 %v439
  %v862 = vpop.f32.mrf.mxu0
  %v863 = vadd.f32 0.0, %v862
  %v864 = vpop.f32.mrf.mxu0
  %v865 = vpop.f32.mrf.mxu0
  %v866 = vadd.f32 0.0, %v865
  %v867 = vpop.f32.mrf.mxu0
  %868 = vmatprep.mubr.bf16.mxu0 0
  %869 = vmatmul.mubr.bf16.gmra.mxu0 %v440
  %v870 = vpop.f32.mrf.mxu0
  %v871 = vadd.f32 0.0, %v870
  %v872 = vpop.f32.mrf.mxu0
  %v873 = vpop.f32.mrf.mxu0
  %v874 = vadd.f32 0.0, %v873
  %v875 = vpop.f32.mrf.mxu0
  %876 = vmatprep.mubr.bf16.mxu0 0
  %877 = vmatmul.mubr.bf16.gmra.mxu0 %v441
  %v878 = vpop.f32.mrf.mxu0
  %v879 = vadd.f32 0.0, %v878
  %v880 = vpop.f32.mrf.mxu0
  %v881 = vpop.f32.mrf.mxu0
  %v882 = vadd.f32 0.0, %v881
  %v883 = vpop.f32.mrf.mxu0
  %884 = vmatprep.mubr.bf16.mxu0 0
  %885 = vmatmul.mubr.bf16.gmra.mxu0 %v442
  %v886 = vpop.f32.mrf.mxu0
  %v887 = vadd.f32 0.0, %v886
  %v888 = vpop.f32.mrf.mxu0
  %v889 = vpop.f32.mrf.mxu0
  %v890 = vadd.f32 0.0, %v889
  %v891 = vpop.f32.mrf.mxu0
  %892 = vdwg.mxu0
  %v893 = vmul.f32 %v302, %v831
  %v894 = vmul.f32 %v307, %v834
  %v895 = vmul.f32 %v312, %v839
  %v896 = vmul.f32 %v317, %v842
  %v897 = vmul.f32 %v322, %v847
  %v898 = vmul.f32 %v327, %v850
  %v899 = vmul.f32 %v332, %v855
  %v900 = vmul.f32 %v337, %v858
  %v901 = vmul.f32 %v342, %v863
  %v902 = vmul.f32 %v347, %v866
  %v903 = vmul.f32 %v352, %v871
  %v904 = vmul.f32 %v357, %v874
  %v905 = vmul.f32 %v362, %v879
  %v906 = vmul.f32 %v367, %v882
  %v907 = vmul.f32 %v372, %v887
  %v908 = vmul.f32 %v377, %v890
  %v909 = vld [vmem:[%s7] sm:$0x1]
  %v911 = vlaneseq
  %v912 = vshrl.u32 %v911, 7
  %v913 = vsub.s32 0, %v912
  %v914 = vrot.slane %v909, %v913
  %v916 = vadd.f32 %v893, %v914
  %v917 = vadd.f32 %v894, %v914
  %v918 = vadd.f32 %v895, %v914
  %v919 = vadd.f32 %v896, %v914
  %v920 = vadd.f32 %v897, %v914
  %v921 = vadd.f32 %v898, %v914
  %v922 = vadd.f32 %v899, %v914
  %v923 = vadd.f32 %v900, %v914
  %v924 = vadd.f32 %v901, %v914
  %v925 = vadd.f32 %v902, %v914
  %v926 = vadd.f32 %v903, %v914
  %v927 = vadd.f32 %v904, %v914
  %v928 = vadd.f32 %v905, %v914
  %v929 = vadd.f32 %v906, %v914
  %v930 = vadd.f32 %v907, %v914
  %v931 = vadd.f32 %v908, %v914
  %v932 = vmax.f32 %v916, 0.0
  %v933 = vmax.f32 %v917, 0.0
  %v934 = vmax.f32 %v918, 0.0
  %v935 = vmax.f32 %v919, 0.0
  %v936 = vmax.f32 %v920, 0.0
  %v937 = vmax.f32 %v921, 0.0
  %v938 = vmax.f32 %v922, 0.0
  %v939 = vmax.f32 %v923, 0.0
  %v940 = vmax.f32 %v924, 0.0
  %v941 = vmax.f32 %v925, 0.0
  %v942 = vmax.f32 %v926, 0.0
  %v943 = vmax.f32 %v927, 0.0
  %v944 = vmax.f32 %v928, 0.0
  %v945 = vmax.f32 %v929, 0.0
  %v946 = vmax.f32 %v930, 0.0
  %v947 = vmax.f32 %v931, 0.0
  %v948 = vpack.c.bf16 %v933, %v932
  %v949 = vpack.c.bf16 %v935, %v934
  %v950 = vpack.c.bf16 %v937, %v936
  %v951 = vpack.c.bf16 %v939, %v938
  %v952 = vpack.c.bf16 %v941, %v940
  %v953 = vpack.c.bf16 %v943, %v942
  %v954 = vpack.c.bf16 %v945, %v944
  %v955 = vpack.c.bf16 %v947, %v946
  %v956 = vld [vmem:[%s8] sm:$0xf]
  %v957 = vld [vmem:[%s8 + $0x4] sm:$0xf]
  %v958 = vld [vmem:[%s8 + $0x8] sm:$0xf]
  %v959 = vld [vmem:[%s8 + $0xc] sm:$0xf]
  %v960 = vld [vmem:[%s8 + $0x10] sm:$0xf]
  %v961 = vld [vmem:[%s8 + $0x14] sm:$0xf]
  %v962 = vld [vmem:[%s8 + $0x18] sm:$0xf]
  %v963 = vld [vmem:[%s8 + $0x1c] sm:$0xf]
  %v964 = vld [vmem:[%s8 + $0x20] sm:$0xf]
  %v965 = vld [vmem:[%s8 + $0x24] sm:$0xf]
  %v966 = vld [vmem:[%s8 + $0x28] sm:$0xf]
  %v967 = vld [vmem:[%s8 + $0x2c] sm:$0xf]
  %v968 = vld [vmem:[%s8 + $0x30] sm:$0xf]
  %v969 = vld [vmem:[%s8 + $0x34] sm:$0xf]
  %v970 = vld [vmem:[%s8 + $0x38] sm:$0xf]
  %v971 = vld [vmem:[%s8 + $0x3c] sm:$0xf]
  %v988 = vunpack.c.l.b16 %v956
  %v989 = vunpack.c.l.b16 %v957
  %v990 = vunpack.c.l.b16 %v958
  %v991 = vunpack.c.l.b16 %v959
  %v992 = vunpack.c.l.b16 %v960
  %v993 = vunpack.c.l.b16 %v961
  %v994 = vunpack.c.l.b16 %v962
  %v995 = vunpack.c.l.b16 %v963
  %v996 = vunpack.c.l.b16 %v964
  %v997 = vunpack.c.l.b16 %v965
  %v998 = vunpack.c.l.b16 %v966
  %v999 = vunpack.c.l.b16 %v967
  %v1000 = vunpack.c.l.b16 %v968
  %v1001 = vunpack.c.l.b16 %v969
  %v1002 = vunpack.c.l.b16 %v970
  %v1003 = vunpack.c.l.b16 %v971
  %v1004 = vpack.c.b16 %v989, %v988
  %v1005 = vpack.c.b16 %v991, %v990
  %v1006 = vpack.c.b16 %v993, %v992
  %v1007 = vpack.c.b16 %v995, %v994
  %v1008 = vpack.c.b16 %v997, %v996
  %v1009 = vpack.c.b16 %v999, %v998
  %v1010 = vpack.c.b16 %v1001, %v1000
  %v1011 = vpack.c.b16 %v1003, %v1002
  %1020 = vmatprep.subr.bf16.mxu0 0
  %1021 = vmatpush1.bf16.msra.mxu0 %v1011
  %1022 = vmatprep.subr.bf16.mxu0 0
  %1023 = vmatpush1.bf16.msra.mxu0 %v1010
  %1024 = vmatprep.subr.bf16.mxu0 0
  %1025 = vmatpush1.bf16.msra.mxu0 %v1009
  %1026 = vmatprep.subr.bf16.mxu0 0
  %1027 = vmatpush1.bf16.msra.mxu0 %v1008
  %1028 = vmatprep.subr.bf16.mxu0 0
  %1029 = vmatpush1.bf16.msra.mxu0 %v1007
  %1030 = vmatprep.subr.bf16.mxu0 0
  %1031 = vmatpush1.bf16.msra.mxu0 %v1006
  %1032 = vmatprep.subr.bf16.mxu0 0
  %1033 = vmatpush1.bf16.msra.mxu0 %v1005
  %1034 = vmatprep.subr.bf16.mxu0 0
  %1035 = vmatpush1.bf16.msra.mxu0 %v1004
  %1036 = vmatprep.subr.bf16.mxu0 0
  %1037 = vmatpush2.bf16.msra.mxu0 0
  %1038 = vmatprep.subr.bf16.mxu0 0
  %1039 = vmatpush2.bf16.msra.mxu0 0
  %1040 = vmatprep.subr.bf16.mxu0 0
  %1041 = vmatpush2.bf16.msra.mxu0 0
  %1042 = vmatprep.subr.bf16.mxu0 0
  %1043 = vmatpush2.bf16.msra.mxu0 0
  %1044 = vmatprep.subr.bf16.mxu0 0
  %1045 = vmatpush2.bf16.msra.mxu0 0
  %1046 = vmatprep.subr.bf16.mxu0 0
  %1047 = vmatpush2.bf16.msra.mxu0 0
  %1048 = vmatprep.subr.bf16.mxu0 0
  %1049 = vmatpush2.bf16.msra.mxu0 0
  %1050 = vmatprep.subr.bf16.mxu0 0
  %1051 = vmatpush2.bf16.msra.mxu0 0
  %1052 = vmatprep.mubr.bf16.mxu0 0
  %1053 = vmatmul.mubr.bf16.gmra.mxu0 %v948
  %v1054 = vpop.f32.mrf.mxu0
  %v1055 = vadd.f32 0.0, %v1054
  %v1056 = vpop.f32.mrf.mxu0
  %v1057 = vpop.f32.mrf.mxu0
  %v1058 = vadd.f32 0.0, %v1057
  %v1059 = vpop.f32.mrf.mxu0
  %1060 = vmatprep.mubr.bf16.mxu0 0
  %1061 = vmatmul.mubr.bf16.gmra.mxu0 %v949
  %v1062 = vpop.f32.mrf.mxu0
  %v1063 = vadd.f32 0.0, %v1062
  %v1064 = vpop.f32.mrf.mxu0
  %v1065 = vpop.f32.mrf.mxu0
  %v1066 = vadd.f32 0.0, %v1065
  %v1067 = vpop.f32.mrf.mxu0
  %1068 = vmatprep.mubr.bf16.mxu0 0
  %1069 = vmatmul.mubr.bf16.gmra.mxu0 %v950
  %v1070 = vpop.f32.mrf.mxu0
  %v1071 = vadd.f32 0.0, %v1070
  %v1072 = vpop.f32.mrf.mxu0
  %v1073 = vpop.f32.mrf.mxu0
  %v1074 = vadd.f32 0.0, %v1073
  %v1075 = vpop.f32.mrf.mxu0
  %1076 = vmatprep.mubr.bf16.mxu0 0
  %1077 = vmatmul.mubr.bf16.gmra.mxu0 %v951
  %v1078 = vpop.f32.mrf.mxu0
  %v1079 = vadd.f32 0.0, %v1078
  %v1080 = vpop.f32.mrf.mxu0
  %v1081 = vpop.f32.mrf.mxu0
  %v1082 = vadd.f32 0.0, %v1081
  %v1083 = vpop.f32.mrf.mxu0
  %1084 = vmatprep.mubr.bf16.mxu0 0
  %1085 = vmatmul.mubr.bf16.gmra.mxu0 %v952
  %v1086 = vpop.f32.mrf.mxu0
  %v1087 = vadd.f32 0.0, %v1086
  %v1088 = vpop.f32.mrf.mxu0
  %v1089 = vpop.f32.mrf.mxu0
  %v1090 = vadd.f32 0.0, %v1089
  %v1091 = vpop.f32.mrf.mxu0
  %1092 = vmatprep.mubr.bf16.mxu0 0
  %1093 = vmatmul.mubr.bf16.gmra.mxu0 %v953
  %v1094 = vpop.f32.mrf.mxu0
  %v1095 = vadd.f32 0.0, %v1094
  %v1096 = vpop.f32.mrf.mxu0
  %v1097 = vpop.f32.mrf.mxu0
  %v1098 = vadd.f32 0.0, %v1097
  %v1099 = vpop.f32.mrf.mxu0
  %1100 = vmatprep.mubr.bf16.mxu0 0
  %1101 = vmatmul.mubr.bf16.gmra.mxu0 %v954
  %v1102 = vpop.f32.mrf.mxu0
  %v1103 = vadd.f32 0.0, %v1102
  %v1104 = vpop.f32.mrf.mxu0
  %v1105 = vpop.f32.mrf.mxu0
  %v1106 = vadd.f32 0.0, %v1105
  %v1107 = vpop.f32.mrf.mxu0
  %1108 = vmatprep.mubr.bf16.mxu0 0
  %1109 = vmatmul.mubr.bf16.gmra.mxu0 %v955
  %v1110 = vpop.f32.mrf.mxu0
  %v1111 = vadd.f32 0.0, %v1110
  %v1112 = vpop.f32.mrf.mxu0
  %v1113 = vpop.f32.mrf.mxu0
  %v1114 = vadd.f32 0.0, %v1113
  %v1115 = vpop.f32.mrf.mxu0
  %1116 = vdwg.mxu0
  %v1117 = vmul.f32 %v302, %v1055
  %v1118 = vmul.f32 %v307, %v1058
  %v1119 = vmul.f32 %v312, %v1063
  %v1120 = vmul.f32 %v317, %v1066
  %v1121 = vmul.f32 %v322, %v1071
  %v1122 = vmul.f32 %v327, %v1074
  %v1123 = vmul.f32 %v332, %v1079
  %v1124 = vmul.f32 %v337, %v1082
  %v1125 = vmul.f32 %v342, %v1087
  %v1126 = vmul.f32 %v347, %v1090
  %v1127 = vmul.f32 %v352, %v1095
  %v1128 = vmul.f32 %v357, %v1098
  %v1129 = vmul.f32 %v362, %v1103
  %v1130 = vmul.f32 %v367, %v1106
  %v1131 = vmul.f32 %v372, %v1111
  %v1132 = vmul.f32 %v377, %v1114
  %v1133 = vpack.c.bf16 %v1118, %v1117
  %v1134 = vpack.c.bf16 %v1120, %v1119
  %v1135 = vpack.c.bf16 %v1122, %v1121
  %v1136 = vpack.c.bf16 %v1124, %v1123
  %v1137 = vpack.c.bf16 %v1126, %v1125
  %v1138 = vpack.c.bf16 %v1128, %v1127
  %v1139 = vpack.c.bf16 %v1130, %v1129
  %v1140 = vpack.c.bf16 %v1132, %v1131
  %1141 = vmatprep.subr.bf16.mxu0 0
  %1142 = vmatpush1.bf16.msra.mxu0 %v1140
  %1143 = vmatprep.subr.bf16.mxu0 0
  %1144 = vmatpush1.bf16.msra.mxu0 %v1139
  %1145 = vmatprep.subr.bf16.mxu0 0
  %1146 = vmatpush1.bf16.msra.mxu0 %v1138
  %1147 = vmatprep.subr.bf16.mxu0 0
  %1148 = vmatpush1.bf16.msra.mxu0 %v1137
  %1149 = vmatprep.subr.bf16.mxu0 0
  %1150 = vmatpush1.bf16.msra.mxu0 %v1136
  %1151 = vmatprep.subr.bf16.mxu0 0
  %1152 = vmatpush1.bf16.msra.mxu0 %v1135
  %1153 = vmatprep.subr.bf16.mxu0 0
  %1154 = vmatpush1.bf16.msra.mxu0 %v1134
  %1155 = vmatprep.subr.bf16.mxu0 0
  %1156 = vmatpush1.bf16.msra.mxu0 %v1133
  %1157 = vmatprep.subr.bf16.mxu0 0
  %1158 = vmatpush2.bf16.msra.mxu0 0
  %1159 = vmatprep.subr.bf16.mxu0 0
  %1160 = vmatpush2.bf16.msra.mxu0 0
  %1161 = vmatprep.subr.bf16.mxu0 0
  %1162 = vmatpush2.bf16.msra.mxu0 0
  %1163 = vmatprep.subr.bf16.mxu0 0
  %1164 = vmatpush2.bf16.msra.mxu0 0
  %1165 = vmatprep.subr.bf16.mxu0 0
  %1166 = vmatpush2.bf16.msra.mxu0 0
  %1167 = vmatprep.subr.bf16.mxu0 0
  %1168 = vmatpush2.bf16.msra.mxu0 0
  %1169 = vmatprep.subr.bf16.mxu0 0
  %1170 = vmatpush2.bf16.msra.mxu0 0
  %1171 = vmatprep.subr.bf16.mxu0 0
  %1172 = vmatpush2.bf16.msra.mxu0 0
  %1173 = vmatprep.mubr.bf16.mxu0 0
  %1174 = vmatmul.mubr.bf16.gmra.mxu0 %v435
  %v1175 = vpop.f32.mrf.mxu0
  %v1176 = vadd.f32 0.0, %v1175
  %v1177 = vpop.f32.mrf.mxu0
  %v1178 = vpop.f32.mrf.mxu0
  %v1179 = vadd.f32 0.0, %v1178
  %v1180 = vpop.f32.mrf.mxu0
  %1181 = vmatprep.mubr.bf16.mxu0 0
  %1182 = vmatmul.mubr.bf16.gmra.mxu0 %v436
  %v1183 = vpop.f32.mrf.mxu0
  %v1184 = vadd.f32 0.0, %v1183
  %v1185 = vpop.f32.mrf.mxu0
  %v1186 = vpop.f32.mrf.mxu0
  %v1187 = vadd.f32 0.0, %v1186
  %v1188 = vpop.f32.mrf.mxu0
  %1189 = vmatprep.mubr.bf16.mxu0 0
  %1190 = vmatmul.mubr.bf16.gmra.mxu0 %v437
  %v1191 = vpop.f32.mrf.mxu0
  %v1192 = vadd.f32 0.0, %v1191
  %v1193 = vpop.f32.mrf.mxu0
  %v1194 = vpop.f32.mrf.mxu0
  %v1195 = vadd.f32 0.0, %v1194
  %v1196 = vpop.f32.mrf.mxu0
  %1197 = vmatprep.mubr.bf16.mxu0 0
  %1198 = vmatmul.mubr.bf16.gmra.mxu0 %v438
  %v1199 = vpop.f32.mrf.mxu0
  %v1200 = vadd.f32 0.0, %v1199
  %v1201 = vpop.f32.mrf.mxu0
  %v1202 = vpop.f32.mrf.mxu0
  %v1203 = vadd.f32 0.0, %v1202
  %v1204 = vpop.f32.mrf.mxu0
  %1205 = vmatprep.mubr.bf16.mxu0 0
  %1206 = vmatmul.mubr.bf16.gmra.mxu0 %v439
  %v1207 = vpop.f32.mrf.mxu0
  %v1208 = vadd.f32 0.0, %v1207
  %v1209 = vpop.f32.mrf.mxu0
  %v1210 = vpop.f32.mrf.mxu0
  %v1211 = vadd.f32 0.0, %v1210
  %v1212 = vpop.f32.mrf.mxu0
  %1213 = vmatprep.mubr.bf16.mxu0 0
  %1214 = vmatmul.mubr.bf16.gmra.mxu0 %v440
  %v1215 = vpop.f32.mrf.mxu0
  %v1216 = vadd.f32 0.0, %v1215
  %v1217 = vpop.f32.mrf.mxu0
  %v1218 = vpop.f32.mrf.mxu0
  %v1219 = vadd.f32 0.0, %v1218
  %v1220 = vpop.f32.mrf.mxu0
  %1221 = vmatprep.mubr.bf16.mxu0 0
  %1222 = vmatmul.mubr.bf16.gmra.mxu0 %v441
  %v1223 = vpop.f32.mrf.mxu0
  %v1224 = vadd.f32 0.0, %v1223
  %v1225 = vpop.f32.mrf.mxu0
  %v1226 = vpop.f32.mrf.mxu0
  %v1227 = vadd.f32 0.0, %v1226
  %v1228 = vpop.f32.mrf.mxu0
  %1229 = vmatprep.mubr.bf16.mxu0 0
  %1230 = vmatmul.mubr.bf16.gmra.mxu0 %v442
  %v1231 = vpop.f32.mrf.mxu0
  %v1232 = vadd.f32 0.0, %v1231
  %v1233 = vpop.f32.mrf.mxu0
  %v1234 = vpop.f32.mrf.mxu0
  %v1235 = vadd.f32 0.0, %v1234
  %v1236 = vpop.f32.mrf.mxu0
  %1237 = vdwg.mxu0
  %v1238 = vmul.f32 %v302, %v1176
  %v1239 = vmul.f32 %v307, %v1179
  %v1240 = vmul.f32 %v312, %v1184
  %v1241 = vmul.f32 %v317, %v1187
  %v1242 = vmul.f32 %v322, %v1192
  %v1243 = vmul.f32 %v327, %v1195
  %v1244 = vmul.f32 %v332, %v1200
  %v1245 = vmul.f32 %v337, %v1203
  %v1246 = vmul.f32 %v342, %v1208
  %v1247 = vmul.f32 %v347, %v1211
  %v1248 = vmul.f32 %v352, %v1216
  %v1249 = vmul.f32 %v357, %v1219
  %v1250 = vmul.f32 %v362, %v1224
  %v1251 = vmul.f32 %v367, %v1227
  %v1252 = vmul.f32 %v372, %v1232
  %v1253 = vmul.f32 %v377, %v1235
  %v1254 = vld [vmem:[%s9] sm:$0x1]
  %v1256 = vlaneseq
  %v1257 = vshrl.u32 %v1256, 7
  %v1258 = vsub.s32 0, %v1257
  %v1259 = vrot.slane %v1254, %v1258
  %v1261 = vadd.f32 %v1238, %v1259
  %v1262 = vadd.f32 %v1239, %v1259
  %v1263 = vadd.f32 %v1240, %v1259
  %v1264 = vadd.f32 %v1241, %v1259
  %v1265 = vadd.f32 %v1242, %v1259
  %v1266 = vadd.f32 %v1243, %v1259
  %v1267 = vadd.f32 %v1244, %v1259
  %v1268 = vadd.f32 %v1245, %v1259
  %v1269 = vadd.f32 %v1246, %v1259
  %v1270 = vadd.f32 %v1247, %v1259
  %v1271 = vadd.f32 %v1248, %v1259
  %v1272 = vadd.f32 %v1249, %v1259
  %v1273 = vadd.f32 %v1250, %v1259
  %v1274 = vadd.f32 %v1251, %v1259
  %v1275 = vadd.f32 %v1252, %v1259
  %v1276 = vadd.f32 %v1253, %v1259
  %v1277 = vpack.c.bf16 %v1262, %v1261
  %v1278 = vpack.c.bf16 %v1264, %v1263
  %v1279 = vpack.c.bf16 %v1266, %v1265
  %v1280 = vpack.c.bf16 %v1268, %v1267
  %v1281 = vpack.c.bf16 %v1270, %v1269
  %v1282 = vpack.c.bf16 %v1272, %v1271
  %v1283 = vpack.c.bf16 %v1274, %v1273
  %v1284 = vpack.c.bf16 %v1276, %v1275
  %v1285 = vld [vmem:[%s3] sm:$0xf]
  %1286 = vmatprep.subr.bf16.mxu0 0
  %1287 = vmatpush1.bf16.msra.mxu0 %v1284
  %1288 = vmatprep.subr.bf16.mxu0 0
  %1289 = vmatpush1.bf16.msra.mxu0 %v1283
  %1290 = vmatprep.subr.bf16.mxu0 0
  %1291 = vmatpush1.bf16.msra.mxu0 %v1282
  %1292 = vmatprep.subr.bf16.mxu0 0
  %1293 = vmatpush1.bf16.msra.mxu0 %v1281
  %1294 = vmatprep.subr.bf16.mxu0 0
  %1295 = vmatpush1.bf16.msra.mxu0 %v1280
  %1296 = vmatprep.subr.bf16.mxu0 0
  %1297 = vmatpush1.bf16.msra.mxu0 %v1279
  %1298 = vmatprep.subr.bf16.mxu0 0
  %1299 = vmatpush1.bf16.msra.mxu0 %v1278
  %1300 = vmatprep.subr.bf16.mxu0 0
  %1301 = vmatpush1.bf16.msra.mxu0 %v1277
  %1302 = vmatprep.subr.bf16.mxu0 0
  %1303 = vmatpush2.bf16.msra.mxu0 0
  %1304 = vmatprep.subr.bf16.mxu0 0
  %1305 = vmatpush2.bf16.msra.mxu0 0
  %1306 = vmatprep.subr.bf16.mxu0 0
  %1307 = vmatpush2.bf16.msra.mxu0 0
  %1308 = vmatprep.subr.bf16.mxu0 0
  %1309 = vmatpush2.bf16.msra.mxu0 0
  %1310 = vmatprep.subr.bf16.mxu0 0
  %1311 = vmatpush2.bf16.msra.mxu0 0
  %1312 = vmatprep.subr.bf16.mxu0 0
  %1313 = vmatpush2.bf16.msra.mxu0 0
  %1314 = vmatprep.subr.bf16.mxu0 0
  %1315 = vmatpush2.bf16.msra.mxu0 0
  %1316 = vmatprep.subr.bf16.mxu0 0
  %1317 = vmatpush2.bf16.msra.mxu0 0
  %1318 = vmatprep.mubr.bf16.mxu0 0
  %1319 = vmatmul.mubr.bf16.gmra.mxu0 %v1285
  %v1320 = vpop.f32.mrf.mxu0
  %v1321 = vadd.f32 0.0, %v1320
  %v1322 = vpop.f32.mrf.mxu0
  %v1323 = vpop.f32.mrf.mxu0
  %v1324 = vpop.f32.mrf.mxu0
  %1325 = vdwg.mxu0
  %v1326 = vpack.c.bf16 %v1321, %v1321
  %v1327 = vld [vmem:[%s10] sm:$0xf]
  %v1328 = vld [vmem:[%s10 + $0x4] sm:$0xf]
  %v1329 = vld [vmem:[%s10 + $0x8] sm:$0xf]
  %v1330 = vld [vmem:[%s10 + $0xc] sm:$0xf]
  %v1331 = vld [vmem:[%s10 + $0x10] sm:$0xf]
  %v1332 = vld [vmem:[%s10 + $0x14] sm:$0xf]
  %v1333 = vld [vmem:[%s10 + $0x18] sm:$0xf]
  %v1334 = vld [vmem:[%s10 + $0x1c] sm:$0xf]
  %v1335 = vld [vmem:[%s10 + $0x20] sm:$0xf]
  %v1336 = vld [vmem:[%s10 + $0x24] sm:$0xf]
  %v1337 = vld [vmem:[%s10 + $0x28] sm:$0xf]
  %v1338 = vld [vmem:[%s10 + $0x2c] sm:$0xf]
  %v1339 = vld [vmem:[%s10 + $0x30] sm:$0xf]
  %v1340 = vld [vmem:[%s10 + $0x34] sm:$0xf]
  %v1341 = vld [vmem:[%s10 + $0x38] sm:$0xf]
  %v1342 = vld [vmem:[%s10 + $0x3c] sm:$0xf]
  %v1343 = vld [vmem:[%s11] sm:$0x1]
  %v1345 = vlaneseq
  %v1346 = vshrl.u32 %v1345, 7
  %v1347 = vsub.s32 0, %v1346
  %v1348 = vrot.slane %v1343, %v1347
  %v1366 = vunpack.c.l.b16 %v1327
  %v1367 = vunpack.c.l.b16 %v1328
  %v1368 = vunpack.c.l.b16 %v1329
  %v1369 = vunpack.c.l.b16 %v1330
  %v1370 = vunpack.c.l.b16 %v1331
  %v1371 = vunpack.c.l.b16 %v1332
  %v1372 = vunpack.c.l.b16 %v1333
  %v1373 = vunpack.c.l.b16 %v1334
  %v1374 = vunpack.c.l.b16 %v1335
  %v1375 = vunpack.c.l.b16 %v1336
  %v1376 = vunpack.c.l.b16 %v1337
  %v1377 = vunpack.c.l.b16 %v1338
  %v1378 = vunpack.c.l.b16 %v1339
  %v1379 = vunpack.c.l.b16 %v1340
  %v1380 = vunpack.c.l.b16 %v1341
  %v1381 = vunpack.c.l.b16 %v1342
  %v1382 = vpack.c.b16 %v1367, %v1366
  %v1383 = vpack.c.b16 %v1369, %v1368
  %v1384 = vpack.c.b16 %v1371, %v1370
  %v1385 = vpack.c.b16 %v1373, %v1372
  %v1386 = vpack.c.b16 %v1375, %v1374
  %v1387 = vpack.c.b16 %v1377, %v1376
  %v1388 = vpack.c.b16 %v1379, %v1378
  %v1389 = vpack.c.b16 %v1381, %v1380
  %1398 = vmatprep.subr.bf16.mxu0 0
  %1399 = vmatpush1.bf16.msra.mxu0 %v1389
  %1400 = vmatprep.subr.bf16.mxu0 0
  %1401 = vmatpush1.bf16.msra.mxu0 %v1388
  %1402 = vmatprep.subr.bf16.mxu0 0
  %1403 = vmatpush1.bf16.msra.mxu0 %v1387
  %1404 = vmatprep.subr.bf16.mxu0 0
  %1405 = vmatpush1.bf16.msra.mxu0 %v1386
  %1406 = vmatprep.subr.bf16.mxu0 0
  %1407 = vmatpush1.bf16.msra.mxu0 %v1385
  %1408 = vmatprep.subr.bf16.mxu0 0
  %1409 = vmatpush1.bf16.msra.mxu0 %v1384
  %1410 = vmatprep.subr.bf16.mxu0 0
  %1411 = vmatpush1.bf16.msra.mxu0 %v1383
  %1412 = vmatprep.subr.bf16.mxu0 0
  %1413 = vmatpush1.bf16.msra.mxu0 %v1382
  %1414 = vmatprep.subr.bf16.mxu0 0
  %1415 = vmatpush2.bf16.msra.mxu0 0
  %1416 = vmatprep.subr.bf16.mxu0 0
  %1417 = vmatpush2.bf16.msra.mxu0 0
  %1418 = vmatprep.subr.bf16.mxu0 0
  %1419 = vmatpush2.bf16.msra.mxu0 0
  %1420 = vmatprep.subr.bf16.mxu0 0
  %1421 = vmatpush2.bf16.msra.mxu0 0
  %1422 = vmatprep.subr.bf16.mxu0 0
  %1423 = vmatpush2.bf16.msra.mxu0 0
  %1424 = vmatprep.subr.bf16.mxu0 0
  %1425 = vmatpush2.bf16.msra.mxu0 0
  %1426 = vmatprep.subr.bf16.mxu0 0
  %1427 = vmatpush2.bf16.msra.mxu0 0
  %1428 = vmatprep.subr.bf16.mxu0 0
  %1429 = vmatpush2.bf16.msra.mxu0 0
  %1430 = vmatprep.mubr.bf16.mxu0 0
  %1431 = vmatmul.mubr.bf16.gmra.mxu0 %v1326
  %v1432 = vpop.f32.mrf.mxu0
  %v1433 = vadd.f32 %v1348, %v1432
  %v1434 = vpop.f32.mrf.mxu0
  %v1435 = vpop.f32.mrf.mxu0
  %v1436 = vpop.f32.mrf.mxu0
  %1437 = vdwg.mxu0
  %1438 = vst [vmem:[%s12] sm:$0xff] %v1433
  // Predicated region
  $region50: #{gcn_forward.1} parent=0 // pred_check
    _
  $region51: #{gcn_forward.1} parent=0 // pred_check_branch
    %1440 = sbr.rel (0) target = $region53
  $region52: #{gcn_forward.1} parent=0 // pred_region
    _
  $region53: #{gcn_forward.1} parent=0 // pred_fallthru
    _
  // Predicated region
  $region54: #{gcn_forward.1} parent=0 // pred_check
    _
  $region55: #{gcn_forward.1} parent=0 // pred_check_branch
    %1442 = sbr.rel (0) target = $region57
  $region56: #{gcn_forward.1} parent=0 // pred_region
    _
  $region57: #{gcn_forward.1} parent=0 // pred_fallthru
    _

</llo_original>
